<compile_context>
chip_gen: v7x
topology: tpu7x:2x2x1
jax: 0.10.0
libtpu: 0.0.40
codegen_flags: <defaults>
</compile_context>

<pallas_src>
import functools

import jax
import jax.numpy as jnp
from jax.experimental import pallas as pl
from jax.experimental.pallas import tpu as pltpu

LRELU_SLOPE = 0.1
BN_EPS = 1e-5


# ---------------------------------------------------------------------------
# Fused Block kernel (one batch element per grid step)
# ---------------------------------------------------------------------------
def _block_kernel(*refs, num_blocks):
    if num_blocks:
        (x_ref, t0_ref, s0_ref, b0_ref,
         w1_ref, s1_ref, b1_ref, t3_ref, s3_ref, b3_ref,
         o_ref, xpad_ref) = refs
    else:
        x_ref, t0_ref, s0_ref, b0_ref, o_ref, xpad_ref = refs

    hp, _ = xpad_ref.shape
    H = hp - 2
    WCo = o_ref.shape[-1]

    # Zero once per invocation: only the two halo rows must stay zero; the
    # interior rows are overwritten before every use.
    xpad_ref[...] = jnp.zeros(xpad_ref.shape, jnp.float32)

    def lrelu(y):
        return jnp.where(y >= 0.0, y, LRELU_SLOPE * y)

    def conv3x3(x2d, tap, scale, bias):
        # x2d: (H, W*Ci) value.  tap(ky): (W*Ci, W*Co) band-weight matrix that
        # already folds the kx taps and the 'same' W-padding.
        xpad_ref[pl.ds(1, H), :] = x2d
        acc = jnp.zeros((H, WCo), jnp.float32)
        for ky in range(3):                                 # 3 matmuls total
            acc = acc + jnp.dot(xpad_ref[pl.ds(ky, H), :], tap(ky),
                                preferred_element_type=jnp.float32)
        return lrelu(acc * scale + bias)                    # once per tile

    # conv0: 3x3 s1 p1 + BN + LeakyReLU
    h = conv3x3(x_ref[0], lambda ky: t0_ref[ky], s0_ref[...], b0_ref[...])

    # Residual blocks: h and m stay resident in vregs/VMEM.
    for b in range(num_blocks):
        m = jnp.dot(h, w1_ref[b], preferred_element_type=jnp.float32)
        m = lrelu(m * s1_ref[b] + b1_ref[b])
        r = conv3x3(m, lambda ky, b=b: t3_ref[b, ky], s3_ref[b], b3_ref[b])
        h = h + r

    o_ref[0] = h.astype(o_ref.dtype)                        # one lane-dense store


# ---------------------------------------------------------------------------
# Weight preprocessing (pure JAX, outside the kernel)
# ---------------------------------------------------------------------------
def _toeplitz3x3(w3, W):
    """(3,3,Ci,Co) HWIO weights -> (3, W*Ci, W*Co) per-ky band matrices.

    T_ky[w_in*Ci+ci, w_out*Co+co] = w3[ky, kx, ci, co] with kx = w_in-w_out+1
    (zero outside {0,1,2}); this bakes the kx taps and the W-direction zero
    padding into a single matmul per ky.
    """
    mats = []
    for ky in range(3):
        t = 0.0
        for kx in range(3):
            t = t + jnp.kron(jnp.eye(W, k=1 - kx, dtype=w3.dtype), w3[ky, kx])
        mats.append(t)
    return jnp.stack(mats)


def _lane_affine(v, W):
    # per-channel (C,) vector -> (1, W*C) lane vector matching lane = w*C + c
    return jnp.tile(v, W)[None, :]


def _const_index_map(ndim):
    return lambda n: (0,) * ndim


# ---------------------------------------------------------------------------
# Block forward (Pallas)
# ---------------------------------------------------------------------------
@jax.jit
def block_forward(x_nchw, params):
    N, Cin, H, W = x_nchw.shape
    w0, s0, b0 = params["conv0"]
    Cout = w0.shape[-1]
    num_blocks = len(params["res"])

    # NCHW -> (N, H, W*Cin) lane-interleaved layout (layout plumbing in XLA).
    x2d = jnp.transpose(x_nchw, (0, 2, 3, 1)).reshape(N, H, W * Cin)

    args = [x2d, _toeplitz3x3(w0, W), _lane_affine(s0, W), _lane_affine(b0, W)]
    in_specs = [
        pl.BlockSpec((1, H, W * Cin), lambda n: (n, 0, 0)),
        pl.BlockSpec((3, W * Cin, W * Cout), _const_index_map(3)),
        pl.BlockSpec((1, W * Cout), _const_index_map(2)),
        pl.BlockSpec((1, W * Cout), _const_index_map(2)),
    ]

    if num_blocks:
        w1s, s1s, b1s, t3s, s3s, b3s = [], [], [], [], [], []
        for (w1, s1, b1), (w3, s3, b3) in params["res"]:
            assert w1.shape[-1] == Cin, "ResidualBlock mid channels == in_ch"
            w1s.append(jnp.kron(jnp.eye(W, dtype=w1.dtype), w1))   # (W*Cout, W*Cmid)
            s1s.append(_lane_affine(s1, W))
            b1s.append(_lane_affine(b1, W))
            t3s.append(_toeplitz3x3(w3, W))
            s3s.append(_lane_affine(s3, W))
            b3s.append(_lane_affine(b3, W))
        extra = [jnp.stack(w1s), jnp.stack(s1s), jnp.stack(b1s),
                 jnp.stack(t3s), jnp.stack(s3s), jnp.stack(b3s)]
        args += extra
        in_specs += [pl.BlockSpec(a.shape, _const_index_map(a.ndim)) for a in extra]

    out2d = pl.pallas_call(
        functools.partial(_block_kernel, num_blocks=num_blocks),
        out_shape=jax.ShapeDtypeStruct((N, H, W * Cout), x_nchw.dtype),
        grid=(N,),
        in_specs=in_specs,
        out_specs=pl.BlockSpec((1, H, W * Cout), lambda n: (n, 0, 0)),
        scratch_shapes=[pltpu.VMEM((H + 2, W * Cin), jnp.float32)],
        compiler_params=pltpu.CompilerParams(dimension_semantics=("parallel",)),
    )(*args)

    # (N, H, W*Cout) -> NCHW
    return jnp.transpose(out2d.reshape(N, H, W, Cout), (0, 3, 1, 2))


# ---------------------------------------------------------------------------
# Parameter construction (deterministic, synthetic) + pure-JAX reference
# ---------------------------------------------------------------------------
def _fold_bn(key, ch):
    kg, kb, km, kv = jax.random.split(key, 4)
    gamma = 1.0 + 0.1 * jax.random.normal(kg, (ch,), jnp.float32)
    beta = 0.1 * jax.random.normal(kb, (ch,), jnp.float32)
    mean = 0.05 * jax.random.normal(km, (ch,), jnp.float32)
    var = 0.5 + jax.random.uniform(kv, (ch,), jnp.float32)
    scale = gamma / jnp.sqrt(var + BN_EPS)
    bias = beta - mean * scale
    return scale, bias


def make_block_params(key, in_ch, out_ch, num_blocks):
    keys = jax.random.split(key, 2 + 4 * num_blocks)
    w0 = 0.2 * jax.random.normal(keys[0], (3, 3, in_ch, out_ch), jnp.float32)
    conv0 = (w0,) + _fold_bn(keys[1], out_ch)
    res = []
    for b in range(num_blocks):
        k1w, k1bn, k3w, k3bn = keys[2 + 4 * b: 6 + 4 * b]
        w1 = 0.2 * jax.random.normal(k1w, (out_ch, in_ch), jnp.float32)  # (Ci, Co)
        p1 = (w1,) + _fold_bn(k1bn, in_ch)
        w3 = 0.2 * jax.random.normal(k3w, (3, 3, in_ch, out_ch), jnp.float32)
        p3 = (w3,) + _fold_bn(k3bn, out_ch)
        res.append((p1, p3))
    return {"conv0": conv0, "res": res}


def block_reference(x_nchw, params):
    x = jnp.transpose(x_nchw, (0, 2, 3, 1))

    def lrelu(y):
        return jnp.where(y >= 0, y, LRELU_SLOPE * y)

    def c3(xx, w, s, b):
        y = jax.lax.conv_general_dilated(
            xx, w, window_strides=(1, 1), padding="SAME",
            dimension_numbers=("NHWC", "HWIO", "NHWC"),
            precision=jax.lax.Precision.HIGHEST)
        return lrelu(y * s + b)

    def c1(xx, w, s, b):
        y = jnp.einsum("nhwc,co->nhwo", xx, w,
                       precision=jax.lax.Precision.HIGHEST)
        return lrelu(y * s + b)

    h = c3(x, *params["conv0"])
    for p1, p3 in params["res"]:
        h = h + c3(c1(h, *p1), *p3)
    return jnp.transpose(h, (0, 3, 1, 2))


# ---------------------------------------------------------------------------
if __name__ == "__main__":
    key = jax.random.PRNGKey(0)
    k_x, k_p = jax.random.split(key)

    N, IN_CH, OUT_CH, H, W = 2, 4, 8, 16, 16       # W*OUT_CH = 128 lanes
    NUM_BLOCKS = 2

    x = jax.random.normal(k_x, (N, IN_CH, H, W), jnp.float32)   # NCHW like PyTorch
    params = make_block_params(k_p, IN_CH, OUT_CH, NUM_BLOCKS)

    out = jax.block_until_ready(block_forward(x, params))
    ref = jax.block_until_ready(block_reference(x, params))

    assert out.shape == (N, OUT_CH, H, W), out.shape
    err = float(jnp.max(jnp.abs(out - ref)))
    assert err < 1e-3, err

    print("KERNEL_OK")
</pallas_src>

<mosaic_0001>
module attributes {stable_mosaic.version = 11 : i64} {
  func.func @_block_kernel(%arg0: i32, %arg1: memref<1x16x64xf32, #tpu.memory_space<vmem>>, %arg2: memref<3x64x128xf32, #tpu.memory_space<vmem>>, %arg3: memref<1x128xf32, #tpu.memory_space<vmem>>, %arg4: memref<1x128xf32, #tpu.memory_space<vmem>>, %arg5: memref<2x128x64xf32, #tpu.memory_space<vmem>>, %arg6: memref<2x1x64xf32, #tpu.memory_space<vmem>>, %arg7: memref<2x1x64xf32, #tpu.memory_space<vmem>>, %arg8: memref<2x3x64x128xf32, #tpu.memory_space<vmem>>, %arg9: memref<2x1x128xf32, #tpu.memory_space<vmem>>, %arg10: memref<2x1x128xf32, #tpu.memory_space<vmem>>, %arg11: memref<1x16x128xf32, #tpu.memory_space<vmem>>, %arg12: memref<18x64xf32, #tpu.memory_space<vmem>>) attributes {dimension_semantics = [#tpu.dimension_semantics<parallel>], iteration_bounds = array<i64: 2>, scalar_prefetch = 0 : i64, scratch_operands = 1 : i64, tpu.core_type = #tpu.core_type<tc>, window_params = [{transform_indices = @transform_0, window_bounds = array<i64: 1, 16, 64>}, {pipeline_mode = #tpu.pipeline_mode<synchronous>, transform_indices = @transform_1, window_bounds = array<i64: 3, 64, 128>}, {pipeline_mode = #tpu.pipeline_mode<synchronous>, transform_indices = @transform_2, window_bounds = array<i64: 1, 128>}, {pipeline_mode = #tpu.pipeline_mode<synchronous>, transform_indices = @transform_3, window_bounds = array<i64: 1, 128>}, {pipeline_mode = #tpu.pipeline_mode<synchronous>, transform_indices = @transform_4, window_bounds = array<i64: 2, 128, 64>}, {pipeline_mode = #tpu.pipeline_mode<synchronous>, transform_indices = @transform_5, window_bounds = array<i64: 2, 1, 64>}, {pipeline_mode = #tpu.pipeline_mode<synchronous>, transform_indices = @transform_6, window_bounds = array<i64: 2, 1, 64>}, {pipeline_mode = #tpu.pipeline_mode<synchronous>, transform_indices = @transform_7, window_bounds = array<i64: 2, 3, 64, 128>}, {pipeline_mode = #tpu.pipeline_mode<synchronous>, transform_indices = @transform_8, window_bounds = array<i64: 2, 1, 128>}, {pipeline_mode = #tpu.pipeline_mode<synchronous>, transform_indices = @transform_9, window_bounds = array<i64: 2, 1, 128>}, {transform_indices = @transform_10, window_bounds = array<i64: 1, 16, 128>}]} {
    %cst = arith.constant 0.000000e+00 : f32
    %0 = vector.broadcast %cst : f32 to vector<18x64xf32>
    %c0 = arith.constant 0 : index
    %c0_0 = arith.constant 0 : index
    %1 = vector.load %arg12[%c0, %c0_0] : memref<18x64xf32, #tpu.memory_space<vmem>>, vector<18x64xf32>
    tpu.vector_store %arg12[%c0, %c0_0], %0 {strides = array<i32>} : memref<18x64xf32, #tpu.memory_space<vmem>>, vector<18x64xf32>,
    %c0_1 = arith.constant 0 : index
    %c0_2 = arith.constant 0 : index
    %c0_3 = arith.constant 0 : index
    %2 = vector.load %arg1[%c0_1, %c0_2, %c0_3] : memref<1x16x64xf32, #tpu.memory_space<vmem>>, vector<1x16x64xf32>
    %3 = vector.shape_cast %2 : vector<1x16x64xf32> to vector<16x64xf32>
    %c0_4 = arith.constant 0 : index
    %c0_5 = arith.constant 0 : index
    %4 = vector.load %arg3[%c0_4, %c0_5] : memref<1x128xf32, #tpu.memory_space<vmem>>, vector<1x128xf32>
    %c0_6 = arith.constant 0 : index
    %c0_7 = arith.constant 0 : index
    %5 = vector.load %arg4[%c0_6, %c0_7] : memref<1x128xf32, #tpu.memory_space<vmem>>, vector<1x128xf32>
    %c1 = arith.constant 1 : index
    %c0_8 = arith.constant 0 : index
    %6 = vector.load %arg12[%c1, %c0_8] : memref<18x64xf32, #tpu.memory_space<vmem>>, vector<16x64xf32>
    tpu.vector_store %arg12[%c1, %c0_8], %3 {strides = array<i32>} : memref<18x64xf32, #tpu.memory_space<vmem>>, vector<16x64xf32>,
    %cst_9 = arith.constant 0.000000e+00 : f32
    %7 = vector.broadcast %cst_9 : f32 to vector<16x128xf32>
    %c0_10 = arith.constant 0 : index
    %c0_11 = arith.constant 0 : index
    %8 = vector.load %arg12[%c0_10, %c0_11] : memref<18x64xf32, #tpu.memory_space<vmem>>, vector<16x64xf32>
    %c0_12 = arith.constant 0 : index
    %c0_13 = arith.constant 0 : index
    %c0_14 = arith.constant 0 : index
    %9 = vector.load %arg2[%c0_12, %c0_13, %c0_14] : memref<3x64x128xf32, #tpu.memory_space<vmem>>, vector<1x64x128xf32>
    %10 = vector.shape_cast %9 : vector<1x64x128xf32> to vector<64x128xf32>
    %cst_15 = arith.constant dense<0.000000e+00> : vector<16x128xf32>
    %11 = tpu.matmul %8, %10, %cst_15 {dimension_numbers = #tpu.dot_dimension_numbers<[1], [0], [0], [1], [0, 0, 1, 1], [], []>} : vector<16x64xf32>, vector<64x128xf32>, vector<16x128xf32> -> vector<16x128xf32>
    %12 = arith.addf %7, %11 : vector<16x128xf32>
    %c1_16 = arith.constant 1 : index
    %c0_17 = arith.constant 0 : index
    %13 = vector.load %arg12[%c1_16, %c0_17] : memref<18x64xf32, #tpu.memory_space<vmem>>, vector<16x64xf32>
    %c1_18 = arith.constant 1 : index
    %c0_19 = arith.constant 0 : index
    %c0_20 = arith.constant 0 : index
    %14 = vector.load %arg2[%c1_18, %c0_19, %c0_20] : memref<3x64x128xf32, #tpu.memory_space<vmem>>, vector<1x64x128xf32>
    %15 = vector.shape_cast %14 : vector<1x64x128xf32> to vector<64x128xf32>
    %cst_21 = arith.constant dense<0.000000e+00> : vector<16x128xf32>
    %16 = tpu.matmul %13, %15, %cst_21 {dimension_numbers = #tpu.dot_dimension_numbers<[1], [0], [0], [1], [0, 0, 1, 1], [], []>} : vector<16x64xf32>, vector<64x128xf32>, vector<16x128xf32> -> vector<16x128xf32>
    %17 = arith.addf %12, %16 : vector<16x128xf32>
    %c2 = arith.constant 2 : index
    %c0_22 = arith.constant 0 : index
    %18 = vector.load %arg12[%c2, %c0_22] : memref<18x64xf32, #tpu.memory_space<vmem>>, vector<16x64xf32>
    %c2_23 = arith.constant 2 : index
    %c0_24 = arith.constant 0 : index
    %c0_25 = arith.constant 0 : index
    %19 = vector.load %arg2[%c2_23, %c0_24, %c0_25] : memref<3x64x128xf32, #tpu.memory_space<vmem>>, vector<1x64x128xf32>
    %20 = vector.shape_cast %19 : vector<1x64x128xf32> to vector<64x128xf32>
    %cst_26 = arith.constant dense<0.000000e+00> : vector<16x128xf32>
    %21 = tpu.matmul %18, %20, %cst_26 {dimension_numbers = #tpu.dot_dimension_numbers<[1], [0], [0], [1], [0, 0, 1, 1], [], []>} : vector<16x64xf32>, vector<64x128xf32>, vector<16x128xf32> -> vector<16x128xf32>
    %22 = arith.addf %17, %21 : vector<16x128xf32>
    %23 = vector.broadcast %4 : vector<1x128xf32> to vector<16x128xf32>
    %24 = arith.mulf %22, %23 : vector<16x128xf32>
    %25 = vector.broadcast %5 : vector<1x128xf32> to vector<16x128xf32>
    %26 = arith.addf %24, %25 : vector<16x128xf32>
    %cst_27 = arith.constant 0.000000e+00 : f32
    %27 = vector.broadcast %cst_27 : f32 to vector<16x128xf32>
    %28 = arith.cmpf oge, %26, %27 : vector<16x128xf32>
    %cst_28 = arith.constant 1.000000e-01 : f32
    %29 = vector.broadcast %cst_28 : f32 to vector<16x128xf32>
    %30 = arith.mulf %29, %26 : vector<16x128xf32>
    %31 = arith.select %28, %26, %30 : vector<16x128xi1>, vector<16x128xf32>
    %c0_29 = arith.constant 0 : index
    %c0_30 = arith.constant 0 : index
    %c0_31 = arith.constant 0 : index
    %32 = vector.load %arg5[%c0_29, %c0_30, %c0_31] : memref<2x128x64xf32, #tpu.memory_space<vmem>>, vector<1x128x64xf32>
    %33 = vector.shape_cast %32 : vector<1x128x64xf32> to vector<128x64xf32>
    %cst_32 = arith.constant dense<0.000000e+00> : vector<16x64xf32>
    %34 = tpu.matmul %31, %33, %cst_32 {dimension_numbers = #tpu.dot_dimension_numbers<[1], [0], [0], [1], [0, 0, 1, 1], [], []>} : vector<16x128xf32>, vector<128x64xf32>, vector<16x64xf32> -> vector<16x64xf32>
    %c0_33 = arith.constant 0 : index
    %c0_34 = arith.constant 0 : index
    %c0_35 = arith.constant 0 : index
    %35 = vector.load %arg6[%c0_33, %c0_34, %c0_35] : memref<2x1x64xf32, #tpu.memory_space<vmem>>, vector<1x1x64xf32>
    %36 = vector.shape_cast %35 : vector<1x1x64xf32> to vector<1x64xf32>
    %37 = vector.broadcast %36 : vector<1x64xf32> to vector<16x64xf32>
    %38 = arith.mulf %34, %37 : vector<16x64xf32>
    %c0_36 = arith.constant 0 : index
    %c0_37 = arith.constant 0 : index
    %c0_38 = arith.constant 0 : index
    %39 = vector.load %arg7[%c0_36, %c0_37, %c0_38] : memref<2x1x64xf32, #tpu.memory_space<vmem>>, vector<1x1x64xf32>
    %40 = vector.shape_cast %39 : vector<1x1x64xf32> to vector<1x64xf32>
    %41 = vector.broadcast %40 : vector<1x64xf32> to vector<16x64xf32>
    %42 = arith.addf %38, %41 : vector<16x64xf32>
    %cst_39 = arith.constant 0.000000e+00 : f32
    %43 = vector.broadcast %cst_39 : f32 to vector<16x64xf32>
    %44 = arith.cmpf oge, %42, %43 : vector<16x64xf32>
    %cst_40 = arith.constant 1.000000e-01 : f32
    %45 = vector.broadcast %cst_40 : f32 to vector<16x64xf32>
    %46 = arith.mulf %45, %42 : vector<16x64xf32>
    %47 = arith.select %44, %42, %46 : vector<16x64xi1>, vector<16x64xf32>
    %c0_41 = arith.constant 0 : index
    %c0_42 = arith.constant 0 : index
    %c0_43 = arith.constant 0 : index
    %48 = vector.load %arg9[%c0_41, %c0_42, %c0_43] : memref<2x1x128xf32, #tpu.memory_space<vmem>>, vector<1x1x128xf32>
    %49 = vector.shape_cast %48 : vector<1x1x128xf32> to vector<1x128xf32>
    %c0_44 = arith.constant 0 : index
    %c0_45 = arith.constant 0 : index
    %c0_46 = arith.constant 0 : index
    %50 = vector.load %arg10[%c0_44, %c0_45, %c0_46] : memref<2x1x128xf32, #tpu.memory_space<vmem>>, vector<1x1x128xf32>
    %51 = vector.shape_cast %50 : vector<1x1x128xf32> to vector<1x128xf32>
    %c1_47 = arith.constant 1 : index
    %c0_48 = arith.constant 0 : index
    %52 = vector.load %arg12[%c1_47, %c0_48] : memref<18x64xf32, #tpu.memory_space<vmem>>, vector<16x64xf32>
    tpu.vector_store %arg12[%c1_47, %c0_48], %47 {strides = array<i32>} : memref<18x64xf32, #tpu.memory_space<vmem>>, vector<16x64xf32>,
    %cst_49 = arith.constant 0.000000e+00 : f32
    %53 = vector.broadcast %cst_49 : f32 to vector<16x128xf32>
    %c0_50 = arith.constant 0 : index
    %c0_51 = arith.constant 0 : index
    %54 = vector.load %arg12[%c0_50, %c0_51] : memref<18x64xf32, #tpu.memory_space<vmem>>, vector<16x64xf32>
    %c0_52 = arith.constant 0 : index
    %c0_53 = arith.constant 0 : index
    %c0_54 = arith.constant 0 : index
    %c0_55 = arith.constant 0 : index
    %55 = vector.load %arg8[%c0_52, %c0_53, %c0_54, %c0_55] : memref<2x3x64x128xf32, #tpu.memory_space<vmem>>, vector<1x1x64x128xf32>
    %56 = vector.shape_cast %55 : vector<1x1x64x128xf32> to vector<64x128xf32>
    %cst_56 = arith.constant dense<0.000000e+00> : vector<16x128xf32>
    %57 = tpu.matmul %54, %56, %cst_56 {dimension_numbers = #tpu.dot_dimension_numbers<[1], [0], [0], [1], [0, 0, 1, 1], [], []>} : vector<16x64xf32>, vector<64x128xf32>, vector<16x128xf32> -> vector<16x128xf32>
    %58 = arith.addf %53, %57 : vector<16x128xf32>
    %c1_57 = arith.constant 1 : index
    %c0_58 = arith.constant 0 : index
    %59 = vector.load %arg12[%c1_57, %c0_58] : memref<18x64xf32, #tpu.memory_space<vmem>>, vector<16x64xf32>
    %c0_59 = arith.constant 0 : index
    %c1_60 = arith.constant 1 : index
    %c0_61 = arith.constant 0 : index
    %c0_62 = arith.constant 0 : index
    %60 = vector.load %arg8[%c0_59, %c1_60, %c0_61, %c0_62] : memref<2x3x64x128xf32, #tpu.memory_space<vmem>>, vector<1x1x64x128xf32>
    %61 = vector.shape_cast %60 : vector<1x1x64x128xf32> to vector<64x128xf32>
    %cst_63 = arith.constant dense<0.000000e+00> : vector<16x128xf32>
    %62 = tpu.matmul %59, %61, %cst_63 {dimension_numbers = #tpu.dot_dimension_numbers<[1], [0], [0], [1], [0, 0, 1, 1], [], []>} : vector<16x64xf32>, vector<64x128xf32>, vector<16x128xf32> -> vector<16x128xf32>
    %63 = arith.addf %58, %62 : vector<16x128xf32>
    %c2_64 = arith.constant 2 : index
    %c0_65 = arith.constant 0 : index
    %64 = vector.load %arg12[%c2_64, %c0_65] : memref<18x64xf32, #tpu.memory_space<vmem>>, vector<16x64xf32>
    %c0_66 = arith.constant 0 : index
    %c2_67 = arith.constant 2 : index
    %c0_68 = arith.constant 0 : index
    %c0_69 = arith.constant 0 : index
    %65 = vector.load %arg8[%c0_66, %c2_67, %c0_68, %c0_69] : memref<2x3x64x128xf32, #tpu.memory_space<vmem>>, vector<1x1x64x128xf32>
    %66 = vector.shape_cast %65 : vector<1x1x64x128xf32> to vector<64x128xf32>
    %cst_70 = arith.constant dense<0.000000e+00> : vector<16x128xf32>
    %67 = tpu.matmul %64, %66, %cst_70 {dimension_numbers = #tpu.dot_dimension_numbers<[1], [0], [0], [1], [0, 0, 1, 1], [], []>} : vector<16x64xf32>, vector<64x128xf32>, vector<16x128xf32> -> vector<16x128xf32>
    %68 = arith.addf %63, %67 : vector<16x128xf32>
    %69 = vector.broadcast %49 : vector<1x128xf32> to vector<16x128xf32>
    %70 = arith.mulf %68, %69 : vector<16x128xf32>
    %71 = vector.broadcast %51 : vector<1x128xf32> to vector<16x128xf32>
    %72 = arith.addf %70, %71 : vector<16x128xf32>
    %cst_71 = arith.constant 0.000000e+00 : f32
    %73 = vector.broadcast %cst_71 : f32 to vector<16x128xf32>
    %74 = arith.cmpf oge, %72, %73 : vector<16x128xf32>
    %cst_72 = arith.constant 1.000000e-01 : f32
    %75 = vector.broadcast %cst_72 : f32 to vector<16x128xf32>
    %76 = arith.mulf %75, %72 : vector<16x128xf32>
    %77 = arith.select %74, %72, %76 : vector<16x128xi1>, vector<16x128xf32>
    %78 = arith.addf %31, %77 : vector<16x128xf32>
    %c1_73 = arith.constant 1 : index
    %c0_74 = arith.constant 0 : index
    %c0_75 = arith.constant 0 : index
    %79 = vector.load %arg5[%c1_73, %c0_74, %c0_75] : memref<2x128x64xf32, #tpu.memory_space<vmem>>, vector<1x128x64xf32>
    %80 = vector.shape_cast %79 : vector<1x128x64xf32> to vector<128x64xf32>
    %cst_76 = arith.constant dense<0.000000e+00> : vector<16x64xf32>
    %81 = tpu.matmul %78, %80, %cst_76 {dimension_numbers = #tpu.dot_dimension_numbers<[1], [0], [0], [1], [0, 0, 1, 1], [], []>} : vector<16x128xf32>, vector<128x64xf32>, vector<16x64xf32> -> vector<16x64xf32>
    %c1_77 = arith.constant 1 : index
    %c0_78 = arith.constant 0 : index
    %c0_79 = arith.constant 0 : index
    %82 = vector.load %arg6[%c1_77, %c0_78, %c0_79] : memref<2x1x64xf32, #tpu.memory_space<vmem>>, vector<1x1x64xf32>
    %83 = vector.shape_cast %82 : vector<1x1x64xf32> to vector<1x64xf32>
    %84 = vector.broadcast %83 : vector<1x64xf32> to vector<16x64xf32>
    %85 = arith.mulf %81, %84 : vector<16x64xf32>
    %c1_80 = arith.constant 1 : index
    %c0_81 = arith.constant 0 : index
    %c0_82 = arith.constant 0 : index
    %86 = vector.load %arg7[%c1_80, %c0_81, %c0_82] : memref<2x1x64xf32, #tpu.memory_space<vmem>>, vector<1x1x64xf32>
    %87 = vector.shape_cast %86 : vector<1x1x64xf32> to vector<1x64xf32>
    %88 = vector.broadcast %87 : vector<1x64xf32> to vector<16x64xf32>
    %89 = arith.addf %85, %88 : vector<16x64xf32>
    %cst_83 = arith.constant 0.000000e+00 : f32
    %90 = vector.broadcast %cst_83 : f32 to vector<16x64xf32>
    %91 = arith.cmpf oge, %89, %90 : vector<16x64xf32>
    %cst_84 = arith.constant 1.000000e-01 : f32
    %92 = vector.broadcast %cst_84 : f32 to vector<16x64xf32>
    %93 = arith.mulf %92, %89 : vector<16x64xf32>
    %94 = arith.select %91, %89, %93 : vector<16x64xi1>, vector<16x64xf32>
    %c1_85 = arith.constant 1 : index
    %c0_86 = arith.constant 0 : index
    %c0_87 = arith.constant 0 : index
    %95 = vector.load %arg9[%c1_85, %c0_86, %c0_87] : memref<2x1x128xf32, #tpu.memory_space<vmem>>, vector<1x1x128xf32>
    %96 = vector.shape_cast %95 : vector<1x1x128xf32> to vector<1x128xf32>
    %c1_88 = arith.constant 1 : index
    %c0_89 = arith.constant 0 : index
    %c0_90 = arith.constant 0 : index
    %97 = vector.load %arg10[%c1_88, %c0_89, %c0_90] : memref<2x1x128xf32, #tpu.memory_space<vmem>>, vector<1x1x128xf32>
    %98 = vector.shape_cast %97 : vector<1x1x128xf32> to vector<1x128xf32>
    %c1_91 = arith.constant 1 : index
    %c0_92 = arith.constant 0 : index
    %99 = vector.load %arg12[%c1_91, %c0_92] : memref<18x64xf32, #tpu.memory_space<vmem>>, vector<16x64xf32>
    tpu.vector_store %arg12[%c1_91, %c0_92], %94 {strides = array<i32>} : memref<18x64xf32, #tpu.memory_space<vmem>>, vector<16x64xf32>,
    %cst_93 = arith.constant 0.000000e+00 : f32
    %100 = vector.broadcast %cst_93 : f32 to vector<16x128xf32>
    %c0_94 = arith.constant 0 : index
    %c0_95 = arith.constant 0 : index
    %101 = vector.load %arg12[%c0_94, %c0_95] : memref<18x64xf32, #tpu.memory_space<vmem>>, vector<16x64xf32>
    %c1_96 = arith.constant 1 : index
    %c0_97 = arith.constant 0 : index
    %c0_98 = arith.constant 0 : index
    %c0_99 = arith.constant 0 : index
    %102 = vector.load %arg8[%c1_96, %c0_97, %c0_98, %c0_99] : memref<2x3x64x128xf32, #tpu.memory_space<vmem>>, vector<1x1x64x128xf32>
    %103 = vector.shape_cast %102 : vector<1x1x64x128xf32> to vector<64x128xf32>
    %cst_100 = arith.constant dense<0.000000e+00> : vector<16x128xf32>
    %104 = tpu.matmul %101, %103, %cst_100 {dimension_numbers = #tpu.dot_dimension_numbers<[1], [0], [0], [1], [0, 0, 1, 1], [], []>} : vector<16x64xf32>, vector<64x128xf32>, vector<16x128xf32> -> vector<16x128xf32>
    %105 = arith.addf %100, %104 : vector<16x128xf32>
    %c1_101 = arith.constant 1 : index
    %c0_102 = arith.constant 0 : index
    %106 = vector.load %arg12[%c1_101, %c0_102] : memref<18x64xf32, #tpu.memory_space<vmem>>, vector<16x64xf32>
    %c1_103 = arith.constant 1 : index
    %c1_104 = arith.constant 1 : index
    %c0_105 = arith.constant 0 : index
    %c0_106 = arith.constant 0 : index
    %107 = vector.load %arg8[%c1_103, %c1_104, %c0_105, %c0_106] : memref<2x3x64x128xf32, #tpu.memory_space<vmem>>, vector<1x1x64x128xf32>
    %108 = vector.shape_cast %107 : vector<1x1x64x128xf32> to vector<64x128xf32>
    %cst_107 = arith.constant dense<0.000000e+00> : vector<16x128xf32>
    %109 = tpu.matmul %106, %108, %cst_107 {dimension_numbers = #tpu.dot_dimension_numbers<[1], [0], [0], [1], [0, 0, 1, 1], [], []>} : vector<16x64xf32>, vector<64x128xf32>, vector<16x128xf32> -> vector<16x128xf32>
    %110 = arith.addf %105, %109 : vector<16x128xf32>
    %c2_108 = arith.constant 2 : index
    %c0_109 = arith.constant 0 : index
    %111 = vector.load %arg12[%c2_108, %c0_109] : memref<18x64xf32, #tpu.memory_space<vmem>>, vector<16x64xf32>
    %c1_110 = arith.constant 1 : index
    %c2_111 = arith.constant 2 : index
    %c0_112 = arith.constant 0 : index
    %c0_113 = arith.constant 0 : index
    %112 = vector.load %arg8[%c1_110, %c2_111, %c0_112, %c0_113] : memref<2x3x64x128xf32, #tpu.memory_space<vmem>>, vector<1x1x64x128xf32>
    %113 = vector.shape_cast %112 : vector<1x1x64x128xf32> to vector<64x128xf32>
    %cst_114 = arith.constant dense<0.000000e+00> : vector<16x128xf32>
    %114 = tpu.matmul %111, %113, %cst_114 {dimension_numbers = #tpu.dot_dimension_numbers<[1], [0], [0], [1], [0, 0, 1, 1], [], []>} : vector<16x64xf32>, vector<64x128xf32>, vector<16x128xf32> -> vector<16x128xf32>
    %115 = arith.addf %110, %114 : vector<16x128xf32>
    %116 = vector.broadcast %96 : vector<1x128xf32> to vector<16x128xf32>
    %117 = arith.mulf %115, %116 : vector<16x128xf32>
    %118 = vector.broadcast %98 : vector<1x128xf32> to vector<16x128xf32>
    %119 = arith.addf %117, %118 : vector<16x128xf32>
    %cst_115 = arith.constant 0.000000e+00 : f32
    %120 = vector.broadcast %cst_115 : f32 to vector<16x128xf32>
    %121 = arith.cmpf oge, %119, %120 : vector<16x128xf32>
    %cst_116 = arith.constant 1.000000e-01 : f32
    %122 = vector.broadcast %cst_116 : f32 to vector<16x128xf32>
    %123 = arith.mulf %122, %119 : vector<16x128xf32>
    %124 = arith.select %121, %119, %123 : vector<16x128xi1>, vector<16x128xf32>
    %125 = arith.addf %78, %124 : vector<16x128xf32>
    %c0_117 = arith.constant 0 : index
    %c0_118 = arith.constant 0 : index
    %c0_119 = arith.constant 0 : index
    %126 = vector.load %arg11[%c0_117, %c0_118, %c0_119] : memref<1x16x128xf32, #tpu.memory_space<vmem>>, vector<1x16x128xf32>
    %127 = vector.shape_cast %126 : vector<1x16x128xf32> to vector<16x128xf32>
    %128 = vector.shape_cast %125 : vector<16x128xf32> to vector<1x16x128xf32>
    tpu.vector_store %arg11[%c0_117, %c0_118, %c0_119], %128 {strides = array<i32>} : memref<1x16x128xf32, #tpu.memory_space<vmem>>, vector<1x16x128xf32>,
    return
  }
  func.func @transform_0(%arg0: i32) -> (i32, i32, i32) {
    %c0_i32 = arith.constant 0 : i32
    %c0_i32_0 = arith.constant 0 : i32
    %c0_i32_1 = arith.constant 0 : i32
    return %arg0, %c0_i32, %c0_i32_0 : i32, i32, i32
  }
  func.func @transform_1(%arg0: i32) -> (i32, i32, i32) {
    %c0_i32 = arith.constant 0 : i32
    %c0_i32_0 = arith.constant 0 : i32
    %c0_i32_1 = arith.constant 0 : i32
    %c0_i32_2 = arith.constant 0 : i32
    return %c0_i32, %c0_i32_0, %c0_i32_1 : i32, i32, i32
  }
  func.func @transform_2(%arg0: i32) -> (i32, i32) {
    %c0_i32 = arith.constant 0 : i32
    %c0_i32_0 = arith.constant 0 : i32
    %c0_i32_1 = arith.constant 0 : i32
    return %c0_i32, %c0_i32_0 : i32, i32
  }
  func.func @transform_3(%arg0: i32) -> (i32, i32) {
    %c0_i32 = arith.constant 0 : i32
    %c0_i32_0 = arith.constant 0 : i32
    %c0_i32_1 = arith.constant 0 : i32
    return %c0_i32, %c0_i32_0 : i32, i32
  }
  func.func @transform_4(%arg0: i32) -> (i32, i32, i32) {
    %c0_i32 = arith.constant 0 : i32
    %c0_i32_0 = arith.constant 0 : i32
    %c0_i32_1 = arith.constant 0 : i32
    %c0_i32_2 = arith.constant 0 : i32
    return %c0_i32, %c0_i32_0, %c0_i32_1 : i32, i32, i32
  }
  func.func @transform_5(%arg0: i32) -> (i32, i32, i32) {
    %c0_i32 = arith.constant 0 : i32
    %c0_i32_0 = arith.constant 0 : i32
    %c0_i32_1 = arith.constant 0 : i32
    %c0_i32_2 = arith.constant 0 : i32
    return %c0_i32, %c0_i32_0, %c0_i32_1 : i32, i32, i32
  }
  func.func @transform_6(%arg0: i32) -> (i32, i32, i32) {
    %c0_i32 = arith.constant 0 : i32
    %c0_i32_0 = arith.constant 0 : i32
    %c0_i32_1 = arith.constant 0 : i32
    %c0_i32_2 = arith.constant 0 : i32
    return %c0_i32, %c0_i32_0, %c0_i32_1 : i32, i32, i32
  }
  func.func @transform_7(%arg0: i32) -> (i32, i32, i32, i32) {
    %c0_i32 = arith.constant 0 : i32
    %c0_i32_0 = arith.constant 0 : i32
    %c0_i32_1 = arith.constant 0 : i32
    %c0_i32_2 = arith.constant 0 : i32
    %c0_i32_3 = arith.constant 0 : i32
    return %c0_i32, %c0_i32_0, %c0_i32_1, %c0_i32_2 : i32, i32, i32, i32
  }
  func.func @transform_8(%arg0: i32) -> (i32, i32, i32) {
    %c0_i32 = arith.constant 0 : i32
    %c0_i32_0 = arith.constant 0 : i32
    %c0_i32_1 = arith.constant 0 : i32
    %c0_i32_2 = arith.constant 0 : i32
    return %c0_i32, %c0_i32_0, %c0_i32_1 : i32, i32, i32
  }
  func.func @transform_9(%arg0: i32) -> (i32, i32, i32) {
    %c0_i32 = arith.constant 0 : i32
    %c0_i32_0 = arith.constant 0 : i32
    %c0_i32_1 = arith.constant 0 : i32
    %c0_i32_2 = arith.constant 0 : i32
    return %c0_i32, %c0_i32_0, %c0_i32_1 : i32, i32, i32
  }
  func.func @transform_10(%arg0: i32) -> (i32, i32, i32) {
    %c0_i32 = arith.constant 0 : i32
    %c0_i32_0 = arith.constant 0 : i32
    %c0_i32_1 = arith.constant 0 : i32
    return %arg0, %c0_i32, %c0_i32_0 : i32, i32, i32
  }
}

</mosaic_0001>

<llo_original>
// kernel: tile.53
$region0: #{tile.53}
  #allocation0 [shape = 's32[1]{0}', space=sflag, size = 0x4, scoped, tag = 'scoped memory for tile.53']
  %s0 = inlined_call_operand.vmem [shape: f32[8], index: 0, kind: input, shape index: {}]
  %s1 = inlined_call_operand.vmem [shape: f32[16,8], index: 1, kind: output, shape index: {}]
  // Predicated region
  $region2: #{tile.53} parent=0 // pred_check
    _
  $region3: #{tile.53} parent=0 // pred_check_branch
    %3 = sbr.rel (0) target = $region5
  $region4: #{tile.53} parent=0 // pred_region
    _
  $region5: #{tile.53} parent=0 // pred_fallthru
    _
  %v4 = vld [vmem:[%s0] ss:$0 sm:$0xff]
  %5 = vst [vmem:[%s1] sm:$0xff] %v4
  %s6 = scalar_lea.vmem %s1, 8
  %7 = vst [vmem:[%s6] sm:$0xff] %v4

// kernel: tile.63
$region0: #{tile.63}
  #allocation0 [shape = 's32[1]{0}', space=sflag, size = 0x4, scoped, tag = 'scoped memory for tile.63']
  %s0 = inlined_call_operand.vmem [shape: f32[4], index: 0, kind: input, shape index: {}]
  %s1 = inlined_call_operand.vmem [shape: f32[16,4], index: 1, kind: output, shape index: {}]
  // Predicated region
  $region2: #{tile.63} parent=0 // pred_check
    _
  $region3: #{tile.63} parent=0 // pred_check_branch
    %3 = sbr.rel (0) target = $region5
  $region4: #{tile.63} parent=0 // pred_region
    _
  $region5: #{tile.63} parent=0 // pred_fallthru
    _
  %v4 = vld [vmem:[%s0] ss:$0 sm:$0xff]
  %5 = vst [vmem:[%s1] sm:$0xff] %v4
  %s6 = scalar_lea.vmem %s1, 8
  %7 = vst [vmem:[%s6] sm:$0xff] %v4

// kernel: tile.96
$region0: #{tile.96}
  %s0 = inlined_call_operand.vmem [shape: f32[16,8], index: 0, kind: input, shape index: {}]
  %s1 = inlined_call_operand.vmem [shape: f32[1,1,128], index: 1, kind: output, shape index: {}]
  $region1: #{tile.96} parent=0
    #allocation0 [shape = 'u8[4096]{0}', space=vmem, size = 0x1000, scoped, tag = 'scoped mem for output reshape']
    %v2 = vld [vmem:[%s0] sm:$0x1]
    %vm3 = vcmask 64512
    %4 = vst.msk [vmem:[#allocation0] sm:$0x1] %vm3, %v2
    %s5 = scalar_lea.vmem %s0, 15
    %v6 = vld [vmem:[%s5] sm:$0x1]
    %7 = vrot.lane.b32.xlu0 %v6, 120
    %v8 = vpop.permute.xlu0 %7
    %vm9 = vcmask 1048512
    %10 = vst.msk [vmem:[#allocation0] sm:$0x1] %vm9, %v8
    %s11 = scalar_lea.vmem %s0, 14
    %v12 = vld [vmem:[%s11] sm:$0x1]
    %13 = vrot.lane.b32.xlu0 %v12, 112
    %v14 = vpop.permute.xlu0 %13
    %vm15 = vcmask 982912
    %16 = vst.msk [vmem:[#allocation0] sm:$0x1] %vm15, %v14
    %s17 = scalar_lea.vmem %s0, 13
    %v18 = vld [vmem:[%s17] sm:$0x1]
    %19 = vrot.lane.b32.xlu0 %v18, 104
    %v20 = vpop.permute.xlu0 %19
    %vm21 = vcmask 917312
    %22 = vst.msk [vmem:[#allocation0] sm:$0x1] %vm21, %v20
    %s23 = scalar_lea.vmem %s0, 12
    %v24 = vld [vmem:[%s23] sm:$0x1]
    %25 = vrot.lane.b32.xlu0 %v24, 96
    %v26 = vpop.permute.xlu0 %25
    %vm27 = vcmask 851712
    %28 = vst.msk [vmem:[#allocation0] sm:$0x1] %vm27, %v26
    %s29 = scalar_lea.vmem %s0, 11
    %v30 = vld [vmem:[%s29] sm:$0x1]
    %31 = vrot.lane.b32.xlu0 %v30, 88
    %v32 = vpop.permute.xlu0 %31
    %vm33 = vcmask 786112
    %34 = vst.msk [vmem:[#allocation0] sm:$0x1] %vm33, %v32
    %s35 = scalar_lea.vmem %s0, 10
    %v36 = vld [vmem:[%s35] sm:$0x1]
    %37 = vrot.lane.b32.xlu0 %v36, 80
    %v38 = vpop.permute.xlu0 %37
    %vm39 = vcmask 720512
    %40 = vst.msk [vmem:[#allocation0] sm:$0x1] %vm39, %v38
    %s41 = scalar_lea.vmem %s0, 9
    %v42 = vld [vmem:[%s41] sm:$0x1]
    %43 = vrot.lane.b32.xlu0 %v42, 72
    %v44 = vpop.permute.xlu0 %43
    %vm45 = vcmask 654912
    %46 = vst.msk [vmem:[#allocation0] sm:$0x1] %vm45, %v44
    %s47 = scalar_lea.vmem %s0, 8
    %v48 = vld [vmem:[%s47] sm:$0x1]
    %49 = vrot.lane.b32.xlu0 %v48, 64
    %v50 = vpop.permute.xlu0 %49
    %vm51 = vcmask 589312
    %52 = vst.msk [vmem:[#allocation0] sm:$0x1] %vm51, %v50
    %s53 = scalar_lea.vmem %s0, 7
    %v54 = vld [vmem:[%s53] sm:$0x1]
    %55 = vrot.lane.b32.xlu0 %v54, 56
    %v56 = vpop.permute.xlu0 %55
    %vm57 = vcmask 523712
    %58 = vst.msk [vmem:[#allocation0] sm:$0x1] %vm57, %v56
    %s59 = scalar_lea.vmem %s0, 6
    %v60 = vld [vmem:[%s59] sm:$0x1]
    %61 = vrot.lane.b32.xlu0 %v60, 48
    %v62 = vpop.permute.xlu0 %61
    %vm63 = vcmask 458112
    %64 = vst.msk [vmem:[#allocation0] sm:$0x1] %vm63, %v62
    %s65 = scalar_lea.vmem %s0, 5
    %v66 = vld [vmem:[%s65] sm:$0x1]
    %67 = vrot.lane.b32.xlu0 %v66, 40
    %v68 = vpop.permute.xlu0 %67
    %vm69 = vcmask 392512
    %70 = vst.msk [vmem:[#allocation0] sm:$0x1] %vm69, %v68
    %s71 = scalar_lea.vmem %s0, 4
    %v72 = vld [vmem:[%s71] sm:$0x1]
    %73 = vrot.lane.b32.xlu0 %v72, 32
    %v74 = vpop.permute.xlu0 %73
    %vm75 = vcmask 326912
    %76 = vst.msk [vmem:[#allocation0] sm:$0x1] %vm75, %v74
    %s77 = scalar_lea.vmem %s0, 3
    %v78 = vld [vmem:[%s77] sm:$0x1]
    %79 = vrot.lane.b32.xlu0 %v78, 24
    %v80 = vpop.permute.xlu0 %79
    %vm81 = vcmask 261312
    %82 = vst.msk [vmem:[#allocation0] sm:$0x1] %vm81, %v80
    %s83 = scalar_lea.vmem %s0, 2
    %v84 = vld [vmem:[%s83] sm:$0x1]
    %85 = vrot.lane.b32.xlu0 %v84, 16
    %v86 = vpop.permute.xlu0 %85
    %vm87 = vcmask 195712
    %88 = vst.msk [vmem:[#allocation0] sm:$0x1] %vm87, %v86
    %s89 = scalar_lea.vmem %s0, 1
    %v90 = vld [vmem:[%s89] sm:$0x1]
    %91 = vrot.lane.b32.xlu0 %v90, 8
    %v92 = vpop.permute.xlu0 %91
    %vm93 = vcmask 130112
    %94 = vst.msk [vmem:[#allocation0] sm:$0x1] %vm93, %v92
    %s96 = sshllo.u32 0, 1
    %v98 = vld [vmem:[#allocation0] sm:%s96]
    %s99 = sshllo.u32 0, 1
    %100 = vst [vmem:[%s1] sm:%s99] %v98

// kernel: tile.92
$region0: #{tile.92}
  %s0 = inlined_call_operand.vmem [shape: f32[16,4], index: 0, kind: input, shape index: {}]
  %s1 = inlined_call_operand.vmem [shape: f32[1,1,64], index: 1, kind: output, shape index: {}]
  $region1: #{tile.92} parent=0
    #allocation0 [shape = 'u8[4096]{0}', space=vmem, size = 0x1000, scoped, tag = 'scoped mem for output reshape']
    %v2 = vld [vmem:[%s0] sm:$0x1]
    %vm3 = vcmask 31744
    %4 = vst.msk [vmem:[#allocation0] sm:$0x1] %vm3, %v2
    %s5 = scalar_lea.vmem %s0, 15
    %v6 = vld [vmem:[%s5] sm:$0x1]
    %7 = vrot.lane.b32.xlu0 %v6, 60
    %v8 = vpop.permute.xlu0 %7
    %vm9 = vcmask 523744
    %10 = vst.msk [vmem:[#allocation0] sm:$0x1] %vm9, %v8
    %s11 = scalar_lea.vmem %s0, 14
    %v12 = vld [vmem:[%s11] sm:$0x1]
    %13 = vrot.lane.b32.xlu0 %v12, 56
    %v14 = vpop.permute.xlu0 %13
    %vm15 = vcmask 490944
    %16 = vst.msk [vmem:[#allocation0] sm:$0x1] %vm15, %v14
    %s17 = scalar_lea.vmem %s0, 13
    %v18 = vld [vmem:[%s17] sm:$0x1]
    %19 = vrot.lane.b32.xlu0 %v18, 52
    %v20 = vpop.permute.xlu0 %19
    %vm21 = vcmask 458144
    %22 = vst.msk [vmem:[#allocation0] sm:$0x1] %vm21, %v20
    %s23 = scalar_lea.vmem %s0, 12
    %v24 = vld [vmem:[%s23] sm:$0x1]
    %25 = vrot.lane.b32.xlu0 %v24, 48
    %v26 = vpop.permute.xlu0 %25
    %vm27 = vcmask 425344
    %28 = vst.msk [vmem:[#allocation0] sm:$0x1] %vm27, %v26
    %s29 = scalar_lea.vmem %s0, 11
    %v30 = vld [vmem:[%s29] sm:$0x1]
    %31 = vrot.lane.b32.xlu0 %v30, 44
    %v32 = vpop.permute.xlu0 %31
    %vm33 = vcmask 392544
    %34 = vst.msk [vmem:[#allocation0] sm:$0x1] %vm33, %v32
    %s35 = scalar_lea.vmem %s0, 10
    %v36 = vld [vmem:[%s35] sm:$0x1]
    %37 = vrot.lane.b32.xlu0 %v36, 40
    %v38 = vpop.permute.xlu0 %37
    %vm39 = vcmask 359744
    %40 = vst.msk [vmem:[#allocation0] sm:$0x1] %vm39, %v38
    %s41 = scalar_lea.vmem %s0, 9
    %v42 = vld [vmem:[%s41] sm:$0x1]
    %43 = vrot.lane.b32.xlu0 %v42, 36
    %v44 = vpop.permute.xlu0 %43
    %vm45 = vcmask 326944
    %46 = vst.msk [vmem:[#allocation0] sm:$0x1] %vm45, %v44
    %s47 = scalar_lea.vmem %s0, 8
    %v48 = vld [vmem:[%s47] sm:$0x1]
    %49 = vrot.lane.b32.xlu0 %v48, 32
    %v50 = vpop.permute.xlu0 %49
    %vm51 = vcmask 294144
    %52 = vst.msk [vmem:[#allocation0] sm:$0x1] %vm51, %v50
    %s53 = scalar_lea.vmem %s0, 7
    %v54 = vld [vmem:[%s53] sm:$0x1]
    %55 = vrot.lane.b32.xlu0 %v54, 28
    %v56 = vpop.permute.xlu0 %55
    %vm57 = vcmask 261344
    %58 = vst.msk [vmem:[#allocation0] sm:$0x1] %vm57, %v56
    %s59 = scalar_lea.vmem %s0, 6
    %v60 = vld [vmem:[%s59] sm:$0x1]
    %61 = vrot.lane.b32.xlu0 %v60, 24
    %v62 = vpop.permute.xlu0 %61
    %vm63 = vcmask 228544
    %64 = vst.msk [vmem:[#allocation0] sm:$0x1] %vm63, %v62
    %s65 = scalar_lea.vmem %s0, 5
    %v66 = vld [vmem:[%s65] sm:$0x1]
    %67 = vrot.lane.b32.xlu0 %v66, 20
    %v68 = vpop.permute.xlu0 %67
    %vm69 = vcmask 195744
    %70 = vst.msk [vmem:[#allocation0] sm:$0x1] %vm69, %v68
    %s71 = scalar_lea.vmem %s0, 4
    %v72 = vld [vmem:[%s71] sm:$0x1]
    %73 = vrot.lane.b32.xlu0 %v72, 16
    %v74 = vpop.permute.xlu0 %73
    %vm75 = vcmask 162944
    %76 = vst.msk [vmem:[#allocation0] sm:$0x1] %vm75, %v74
    %s77 = scalar_lea.vmem %s0, 3
    %v78 = vld [vmem:[%s77] sm:$0x1]
    %79 = vrot.lane.b32.xlu0 %v78, 12
    %v80 = vpop.permute.xlu0 %79
    %vm81 = vcmask 130144
    %82 = vst.msk [vmem:[#allocation0] sm:$0x1] %vm81, %v80
    %s83 = scalar_lea.vmem %s0, 2
    %v84 = vld [vmem:[%s83] sm:$0x1]
    %85 = vrot.lane.b32.xlu0 %v84, 8
    %v86 = vpop.permute.xlu0 %85
    %vm87 = vcmask 97344
    %88 = vst.msk [vmem:[#allocation0] sm:$0x1] %vm87, %v86
    %s89 = scalar_lea.vmem %s0, 1
    %v90 = vld [vmem:[%s89] sm:$0x1]
    %91 = vrot.lane.b32.xlu0 %v90, 4
    %v92 = vpop.permute.xlu0 %91
    %vm93 = vcmask 64544
    %94 = vst.msk [vmem:[#allocation0] sm:$0x1] %vm93, %v92
    %s96 = sshllo.u32 0, 1
    %v98 = vld [vmem:[#allocation0] sm:%s96]
    %s99 = sshllo.u32 0, 1
    %100 = vst [vmem:[%s1] sm:%s99] %v98

// kernel: tile.54
$region0: #{tile.54}
  %s0 = inlined_call_operand.vmem [shape: f32[16,8], index: 0, kind: input, shape index: {}]
  %s1 = inlined_call_operand.vmem [shape: f32[1,128], index: 1, kind: output, shape index: {}]
  $region1: #{tile.54} parent=0
    #allocation0 [shape = 'u8[4096]{0}', space=vmem, size = 0x1000, scoped, tag = 'scoped mem for output reshape']
    %v2 = vld [vmem:[%s0] sm:$0x1]
    %vm3 = vcmask 64512
    %4 = vst.msk [vmem:[#allocation0] sm:$0x1] %vm3, %v2
    %s5 = scalar_lea.vmem %s0, 15
    %v6 = vld [vmem:[%s5] sm:$0x1]
    %7 = vrot.lane.b32.xlu0 %v6, 120
    %v8 = vpop.permute.xlu0 %7
    %vm9 = vcmask 1048512
    %10 = vst.msk [vmem:[#allocation0] sm:$0x1] %vm9, %v8
    %s11 = scalar_lea.vmem %s0, 14
    %v12 = vld [vmem:[%s11] sm:$0x1]
    %13 = vrot.lane.b32.xlu0 %v12, 112
    %v14 = vpop.permute.xlu0 %13
    %vm15 = vcmask 982912
    %16 = vst.msk [vmem:[#allocation0] sm:$0x1] %vm15, %v14
    %s17 = scalar_lea.vmem %s0, 13
    %v18 = vld [vmem:[%s17] sm:$0x1]
    %19 = vrot.lane.b32.xlu0 %v18, 104
    %v20 = vpop.permute.xlu0 %19
    %vm21 = vcmask 917312
    %22 = vst.msk [vmem:[#allocation0] sm:$0x1] %vm21, %v20
    %s23 = scalar_lea.vmem %s0, 12
    %v24 = vld [vmem:[%s23] sm:$0x1]
    %25 = vrot.lane.b32.xlu0 %v24, 96
    %v26 = vpop.permute.xlu0 %25
    %vm27 = vcmask 851712
    %28 = vst.msk [vmem:[#allocation0] sm:$0x1] %vm27, %v26
    %s29 = scalar_lea.vmem %s0, 11
    %v30 = vld [vmem:[%s29] sm:$0x1]
    %31 = vrot.lane.b32.xlu0 %v30, 88
    %v32 = vpop.permute.xlu0 %31
    %vm33 = vcmask 786112
    %34 = vst.msk [vmem:[#allocation0] sm:$0x1] %vm33, %v32
    %s35 = scalar_lea.vmem %s0, 10
    %v36 = vld [vmem:[%s35] sm:$0x1]
    %37 = vrot.lane.b32.xlu0 %v36, 80
    %v38 = vpop.permute.xlu0 %37
    %vm39 = vcmask 720512
    %40 = vst.msk [vmem:[#allocation0] sm:$0x1] %vm39, %v38
    %s41 = scalar_lea.vmem %s0, 9
    %v42 = vld [vmem:[%s41] sm:$0x1]
    %43 = vrot.lane.b32.xlu0 %v42, 72
    %v44 = vpop.permute.xlu0 %43
    %vm45 = vcmask 654912
    %46 = vst.msk [vmem:[#allocation0] sm:$0x1] %vm45, %v44
    %s47 = scalar_lea.vmem %s0, 8
    %v48 = vld [vmem:[%s47] sm:$0x1]
    %49 = vrot.lane.b32.xlu0 %v48, 64
    %v50 = vpop.permute.xlu0 %49
    %vm51 = vcmask 589312
    %52 = vst.msk [vmem:[#allocation0] sm:$0x1] %vm51, %v50
    %s53 = scalar_lea.vmem %s0, 7
    %v54 = vld [vmem:[%s53] sm:$0x1]
    %55 = vrot.lane.b32.xlu0 %v54, 56
    %v56 = vpop.permute.xlu0 %55
    %vm57 = vcmask 523712
    %58 = vst.msk [vmem:[#allocation0] sm:$0x1] %vm57, %v56
    %s59 = scalar_lea.vmem %s0, 6
    %v60 = vld [vmem:[%s59] sm:$0x1]
    %61 = vrot.lane.b32.xlu0 %v60, 48
    %v62 = vpop.permute.xlu0 %61
    %vm63 = vcmask 458112
    %64 = vst.msk [vmem:[#allocation0] sm:$0x1] %vm63, %v62
    %s65 = scalar_lea.vmem %s0, 5
    %v66 = vld [vmem:[%s65] sm:$0x1]
    %67 = vrot.lane.b32.xlu0 %v66, 40
    %v68 = vpop.permute.xlu0 %67
    %vm69 = vcmask 392512
    %70 = vst.msk [vmem:[#allocation0] sm:$0x1] %vm69, %v68
    %s71 = scalar_lea.vmem %s0, 4
    %v72 = vld [vmem:[%s71] sm:$0x1]
    %73 = vrot.lane.b32.xlu0 %v72, 32
    %v74 = vpop.permute.xlu0 %73
    %vm75 = vcmask 326912
    %76 = vst.msk [vmem:[#allocation0] sm:$0x1] %vm75, %v74
    %s77 = scalar_lea.vmem %s0, 3
    %v78 = vld [vmem:[%s77] sm:$0x1]
    %79 = vrot.lane.b32.xlu0 %v78, 24
    %v80 = vpop.permute.xlu0 %79
    %vm81 = vcmask 261312
    %82 = vst.msk [vmem:[#allocation0] sm:$0x1] %vm81, %v80
    %s83 = scalar_lea.vmem %s0, 2
    %v84 = vld [vmem:[%s83] sm:$0x1]
    %85 = vrot.lane.b32.xlu0 %v84, 16
    %v86 = vpop.permute.xlu0 %85
    %vm87 = vcmask 195712
    %88 = vst.msk [vmem:[#allocation0] sm:$0x1] %vm87, %v86
    %s89 = scalar_lea.vmem %s0, 1
    %v90 = vld [vmem:[%s89] sm:$0x1]
    %91 = vrot.lane.b32.xlu0 %v90, 8
    %v92 = vpop.permute.xlu0 %91
    %vm93 = vcmask 130112
    %94 = vst.msk [vmem:[#allocation0] sm:$0x1] %vm93, %v92
    %s96 = sshllo.u32 0, 1
    %v98 = vld [vmem:[#allocation0] sm:%s96]
    %s99 = sshllo.u32 0, 1
    %100 = vst [vmem:[%s1] sm:%s99] %v98

// kernel: block_forward.1
$region0: #{block_forward.1}
  #allocation0 [shape = 'u32[]', space=smem, size = 0x4, offset = 0x4, fixed_abs, tag = 'smem constant byte address 0x4 - core index']
  #allocation1 [shape = 'u32[144,128]{1,0:T(1,128)}', space=vmem, size = 0x12000, scoped, tag = 'internal scratch']
  #allocation2 [shape = 'f32[18,64]{1,0:T(8,128)}', space=vmem, size = 0x3000, scoped, tag = 'scratch operand']
  %s0 = inlined_call_operand.vmem [shape: f32[2,16,64], index: 0, kind: input, shape index: {}]
  %s1 = inlined_call_operand.vmem [shape: f32[3,64,128], index: 1, kind: input, shape index: {}]
  %s2 = inlined_call_operand.vmem [shape: f32[1,128], index: 2, kind: input, shape index: {}]
  %s3 = inlined_call_operand.vmem [shape: f32[1,128], index: 3, kind: input, shape index: {}]
  %s4 = inlined_call_operand.vmem [shape: f32[2,128,64], index: 4, kind: input, shape index: {}]
  %s5 = inlined_call_operand.vmem [shape: f32[2,1,64], index: 5, kind: input, shape index: {}]
  %s6 = inlined_call_operand.vmem [shape: f32[2,1,64], index: 6, kind: input, shape index: {}]
  %s7 = inlined_call_operand.vmem [shape: f32[2,3,64,128], index: 7, kind: input, shape index: {}]
  %s8 = inlined_call_operand.vmem [shape: f32[2,1,128], index: 8, kind: input, shape index: {}]
  %s9 = inlined_call_operand.vmem [shape: f32[2,1,128], index: 9, kind: input, shape index: {}]
  %s10 = inlined_call_operand.vmem [shape: f32[2,16,128], index: 10, kind: output, shape index: {}]
  %s11 = sld [smem:[#allocation0]]
  $region73: #{block_forward.1} parent=0
    _
  %s13 = ssub.s32 1, %s11
  %s14 = scalar_select 0, %s13, %s11
  loop: start=0, step=1, limit=4
  $region2: #{block_forward.1} parent=0 // loop_pre_header
    _
  $region3: #{block_forward.1} parent=0 // loop_header
    %s16 = sphi 0, %s20
    %p17 = scmp.ge.s32.totalorder %s16, 4
    %s26 = sphi 0, %s28
    %s29 = sphi 0, %s26
    %s30 = sphi 0, %s29
    %s46 = sphi 0, %s30
    %s50 = sphi 0, %s50
    %s52 = sphi 0, %s50
    %s53 = sphi 0, %s52
    %s67 = sphi 0, %s53
    %s71 = sphi 0, %s71
    %s73 = sphi 0, %s71
    %s74 = sphi 0, %s73
    %s88 = sphi 0, %s74
    %s92 = sphi 0, %s92
    %s94 = sphi 0, %s92
    %s95 = sphi 0, %s94
    %s109 = sphi 0, %s95
    %s113 = sphi 0, %s113
    %s115 = sphi 0, %s113
    %s116 = sphi 0, %s115
    %s130 = sphi 0, %s116
    %s134 = sphi 0, %s134
    %s136 = sphi 0, %s134
    %s137 = sphi 0, %s136
    %s151 = sphi 0, %s137
    %s155 = sphi 0, %s155
    %s157 = sphi 0, %s155
    %s158 = sphi 0, %s157
    %s172 = sphi 0, %s158
    %s176 = sphi 0, %s176
    %s178 = sphi 0, %s176
    %s179 = sphi 0, %s178
    %s193 = sphi 0, %s179
    %s197 = sphi 0, %s197
    %s199 = sphi 0, %s197
    %s200 = sphi 0, %s199
    %s214 = sphi 0, %s200
    %s218 = sphi 0, %s218
    %s220 = sphi 0, %s218
    %s221 = sphi 0, %s220
    %s235 = sphi 0, %s221
    %s241 = sphi 0, %s243
    %s244 = sphi 0, %s241
    %s245 = sphi 0, %s244
    %s261 = sphi 0, %s245
  $region4: #{block_forward.1} parent=0 // loop_header_branch
    %19 = sbr.rel (%p17) target = $region8
  $region5: #{block_forward.1} parent=0 // loop_body
    %s21 = ssub.s32 %s16, 1
    %s22 = ssub.s32 %s16, 2
    %s23 = sadd.s32 %s16, 1
    %s24 = ssub.s32 %s16, %s23
    %p25 = scmp.eq.s32.totalorder %s24, 0
    %s27 = sadd.s32 %s26, 1
    %s28 = scalar_select %p25, %s26, %s27
    %p31 = pneg %p25
    %p32 = scmp.eq.s32.totalorder %s16, 1
    %p33 = por %p31, %p32
    %p34 = scmp.ne.s32.totalorder %s26, %s29
    %p35 = scmp.eq.s32.totalorder %s16, 0
    %p36 = por %p34, %p35
    %p37 = scmp.ne.s32.totalorder %s26, %s29
    %p38 = scmp.eq.s32.totalorder %s21, 1
    %p39 = por %p37, %p38
    %p40 = scmp.ne.s32.totalorder %s29, %s30
    %p41 = scmp.eq.s32.totalorder %s21, 0
    %p42 = por %p40, %p41
    %p43 = scmp.ne.s32.totalorder %s29, %s30
    %p44 = scmp.eq.s32.totalorder %s22, 1
    %p45 = por %p43, %p44
    %p47 = scmp.ne.s32.totalorder %s30, %s46
    %p48 = scmp.eq.s32.totalorder %s22, 0
    %p49 = por %p47, %p48
    %s51 = sadd.s32 %s50, 1
    %p54 = scmp.eq.s32.totalorder %s16, 1
    %p55 = scmp.ne.s32.totalorder %s50, %s52
    %p56 = scmp.eq.s32.totalorder %s16, 0
    %p57 = por %p55, %p56
    %p58 = scmp.ne.s32.totalorder %s50, %s52
    %p59 = scmp.eq.s32.totalorder %s21, 1
    %p60 = por %p58, %p59
    %p61 = scmp.ne.s32.totalorder %s52, %s53
    %p62 = scmp.eq.s32.totalorder %s21, 0
    %p63 = por %p61, %p62
    %p64 = scmp.ne.s32.totalorder %s52, %s53
    %p65 = scmp.eq.s32.totalorder %s22, 1
    %p66 = por %p64, %p65
    %p68 = scmp.ne.s32.totalorder %s53, %s67
    %p69 = scmp.eq.s32.totalorder %s22, 0
    %p70 = por %p68, %p69
    %s72 = sadd.s32 %s71, 1
    %p75 = scmp.eq.s32.totalorder %s16, 1
    %p76 = scmp.ne.s32.totalorder %s71, %s73
    %p77 = scmp.eq.s32.totalorder %s16, 0
    %p78 = por %p76, %p77
    %p79 = scmp.ne.s32.totalorder %s71, %s73
    %p80 = scmp.eq.s32.totalorder %s21, 1
    %p81 = por %p79, %p80
    %p82 = scmp.ne.s32.totalorder %s73, %s74
    %p83 = scmp.eq.s32.totalorder %s21, 0
    %p84 = por %p82, %p83
    %p85 = scmp.ne.s32.totalorder %s73, %s74
    %p86 = scmp.eq.s32.totalorder %s22, 1
    %p87 = por %p85, %p86
    %p89 = scmp.ne.s32.totalorder %s74, %s88
    %p90 = scmp.eq.s32.totalorder %s22, 0
    %p91 = por %p89, %p90
    %s93 = sadd.s32 %s92, 1
    %p96 = scmp.eq.s32.totalorder %s16, 1
    %p97 = scmp.ne.s32.totalorder %s92, %s94
    %p98 = scmp.eq.s32.totalorder %s16, 0
    %p99 = por %p97, %p98
    %p100 = scmp.ne.s32.totalorder %s92, %s94
    %p101 = scmp.eq.s32.totalorder %s21, 1
    %p102 = por %p100, %p101
    %p103 = scmp.ne.s32.totalorder %s94, %s95
    %p104 = scmp.eq.s32.totalorder %s21, 0
    %p105 = por %p103, %p104
    %p106 = scmp.ne.s32.totalorder %s94, %s95
    %p107 = scmp.eq.s32.totalorder %s22, 1
    %p108 = por %p106, %p107
    %p110 = scmp.ne.s32.totalorder %s95, %s109
    %p111 = scmp.eq.s32.totalorder %s22, 0
    %p112 = por %p110, %p111
    %s114 = sadd.s32 %s113, 1
    %p117 = scmp.eq.s32.totalorder %s16, 1
    %p118 = scmp.ne.s32.totalorder %s113, %s115
    %p119 = scmp.eq.s32.totalorder %s16, 0
    %p120 = por %p118, %p119
    %p121 = scmp.ne.s32.totalorder %s113, %s115
    %p122 = scmp.eq.s32.totalorder %s21, 1
    %p123 = por %p121, %p122
    %p124 = scmp.ne.s32.totalorder %s115, %s116
    %p125 = scmp.eq.s32.totalorder %s21, 0
    %p126 = por %p124, %p125
    %p127 = scmp.ne.s32.totalorder %s115, %s116
    %p128 = scmp.eq.s32.totalorder %s22, 1
    %p129 = por %p127, %p128
    %p131 = scmp.ne.s32.totalorder %s116, %s130
    %p132 = scmp.eq.s32.totalorder %s22, 0
    %p133 = por %p131, %p132
    %s135 = sadd.s32 %s134, 1
    %p138 = scmp.eq.s32.totalorder %s16, 1
    %p139 = scmp.ne.s32.totalorder %s134, %s136
    %p140 = scmp.eq.s32.totalorder %s16, 0
    %p141 = por %p139, %p140
    %p142 = scmp.ne.s32.totalorder %s134, %s136
    %p143 = scmp.eq.s32.totalorder %s21, 1
    %p144 = por %p142, %p143
    %p145 = scmp.ne.s32.totalorder %s136, %s137
    %p146 = scmp.eq.s32.totalorder %s21, 0
    %p147 = por %p145, %p146
    %p148 = scmp.ne.s32.totalorder %s136, %s137
    %p149 = scmp.eq.s32.totalorder %s22, 1
    %p150 = por %p148, %p149
    %p152 = scmp.ne.s32.totalorder %s137, %s151
    %p153 = scmp.eq.s32.totalorder %s22, 0
    %p154 = por %p152, %p153
    %s156 = sadd.s32 %s155, 1
    %p159 = scmp.eq.s32.totalorder %s16, 1
    %p160 = scmp.ne.s32.totalorder %s155, %s157
    %p161 = scmp.eq.s32.totalorder %s16, 0
    %p162 = por %p160, %p161
    %p163 = scmp.ne.s32.totalorder %s155, %s157
    %p164 = scmp.eq.s32.totalorder %s21, 1
    %p165 = por %p163, %p164
    %p166 = scmp.ne.s32.totalorder %s157, %s158
    %p167 = scmp.eq.s32.totalorder %s21, 0
    %p168 = por %p166, %p167
    %p169 = scmp.ne.s32.totalorder %s157, %s158
    %p170 = scmp.eq.s32.totalorder %s22, 1
    %p171 = por %p169, %p170
    %p173 = scmp.ne.s32.totalorder %s158, %s172
    %p174 = scmp.eq.s32.totalorder %s22, 0
    %p175 = por %p173, %p174
    %s177 = sadd.s32 %s176, 1
    %p180 = scmp.eq.s32.totalorder %s16, 1
    %p181 = scmp.ne.s32.totalorder %s176, %s178
    %p182 = scmp.eq.s32.totalorder %s16, 0
    %p183 = por %p181, %p182
    %p184 = scmp.ne.s32.totalorder %s176, %s178
    %p185 = scmp.eq.s32.totalorder %s21, 1
    %p186 = por %p184, %p185
    %p187 = scmp.ne.s32.totalorder %s178, %s179
    %p188 = scmp.eq.s32.totalorder %s21, 0
    %p189 = por %p187, %p188
    %p190 = scmp.ne.s32.totalorder %s178, %s179
    %p191 = scmp.eq.s32.totalorder %s22, 1
    %p192 = por %p190, %p191
    %p194 = scmp.ne.s32.totalorder %s179, %s193
    %p195 = scmp.eq.s32.totalorder %s22, 0
    %p196 = por %p194, %p195
    %s198 = sadd.s32 %s197, 1
    %p201 = scmp.eq.s32.totalorder %s16, 1
    %p202 = scmp.ne.s32.totalorder %s197, %s199
    %p203 = scmp.eq.s32.totalorder %s16, 0
    %p204 = por %p202, %p203
    %p205 = scmp.ne.s32.totalorder %s197, %s199
    %p206 = scmp.eq.s32.totalorder %s21, 1
    %p207 = por %p205, %p206
    %p208 = scmp.ne.s32.totalorder %s199, %s200
    %p209 = scmp.eq.s32.totalorder %s21, 0
    %p210 = por %p208, %p209
    %p211 = scmp.ne.s32.totalorder %s199, %s200
    %p212 = scmp.eq.s32.totalorder %s22, 1
    %p213 = por %p211, %p212
    %p215 = scmp.ne.s32.totalorder %s200, %s214
    %p216 = scmp.eq.s32.totalorder %s22, 0
    %p217 = por %p215, %p216
    %s219 = sadd.s32 %s218, 1
    %p222 = scmp.eq.s32.totalorder %s16, 1
    %p223 = scmp.ne.s32.totalorder %s218, %s220
    %p224 = scmp.eq.s32.totalorder %s16, 0
    %p225 = por %p223, %p224
    %p226 = scmp.ne.s32.totalorder %s218, %s220
    %p227 = scmp.eq.s32.totalorder %s21, 1
    %p228 = por %p226, %p227
    %p229 = scmp.ne.s32.totalorder %s220, %s221
    %p230 = scmp.eq.s32.totalorder %s21, 0
    %p231 = por %p229, %p230
    %p232 = scmp.ne.s32.totalorder %s220, %s221
    %p233 = scmp.eq.s32.totalorder %s22, 1
    %p234 = por %p232, %p233
    %p236 = scmp.ne.s32.totalorder %s221, %s235
    %p237 = scmp.eq.s32.totalorder %s22, 0
    %p238 = por %p236, %p237
    %s239 = ssub.s32 %s16, %s23
    %p240 = scmp.eq.s32.totalorder %s239, 0
    %s242 = sadd.s32 %s241, 1
    %s243 = scalar_select %p240, %s241, %s242
    %p246 = pneg %p240
    %p247 = scmp.eq.s32.totalorder %s16, 1
    %p248 = por %p246, %p247
    %p249 = scmp.ne.s32.totalorder %s241, %s244
    %p250 = scmp.eq.s32.totalorder %s16, 0
    %p251 = por %p249, %p250
    %p252 = scmp.ne.s32.totalorder %s241, %s244
    %p253 = scmp.eq.s32.totalorder %s21, 1
    %p254 = por %p252, %p253
    %p255 = scmp.ne.s32.totalorder %s244, %s245
    %p256 = scmp.eq.s32.totalorder %s21, 0
    %p257 = por %p255, %p256
    %p258 = scmp.ne.s32.totalorder %s244, %s245
    %p259 = scmp.eq.s32.totalorder %s22, 1
    %p260 = por %p258, %p259
    %p262 = scmp.ne.s32.totalorder %s245, %s261
    %p263 = scmp.eq.s32.totalorder %s22, 0
    %p264 = por %p262, %p263
    %p265 = scmp.le.s32.totalorder 1, %s16
    %p266 = scmp.lt.s32.totalorder %s16, 3
    %p267 = pnand %p265, %p266
    %p268 = pneg %p267
    // Predicated region
    $region9: #{block_forward.1} parent=5 // pred_check
      _
    $region10: #{block_forward.1} parent=5 // pred_check_branch
      %270 = sbr.rel (%p267) target = $region12
    $region11: #{block_forward.1} parent=5 // pred_region
      %s271 = ssub.s32 %s16, 1
      // Predicated region
      $region13: #{block_forward.1} parent=11 // pred_check
        %p272 = pneg %p63
      $region14: #{block_forward.1} parent=11 // pred_check_branch
        %274 = sbr.rel (%p272) target = $region16
      $region15: #{block_forward.1} parent=11 // pred_region
        _
      $region16: #{block_forward.1} parent=11 // pred_fallthru
        _
      // Predicated region
      $region17: #{block_forward.1} parent=11 // pred_check
        %p275 = pneg %p84
      $region18: #{block_forward.1} parent=11 // pred_check_branch
        %277 = sbr.rel (%p275) target = $region20
      $region19: #{block_forward.1} parent=11 // pred_region
        _
      $region20: #{block_forward.1} parent=11 // pred_fallthru
        _
      // Predicated region
      $region21: #{block_forward.1} parent=11 // pred_check
        %p278 = pneg %p105
      $region22: #{block_forward.1} parent=11 // pred_check_branch
        %280 = sbr.rel (%p278) target = $region24
      $region23: #{block_forward.1} parent=11 // pred_region
        _
      $region24: #{block_forward.1} parent=11 // pred_fallthru
        _
      // Predicated region
      $region25: #{block_forward.1} parent=11 // pred_check
        %p281 = pneg %p126
      $region26: #{block_forward.1} parent=11 // pred_check_branch
        %283 = sbr.rel (%p281) target = $region28
      $region27: #{block_forward.1} parent=11 // pred_region
        _
      $region28: #{block_forward.1} parent=11 // pred_fallthru
        _
      // Predicated region
      $region29: #{block_forward.1} parent=11 // pred_check
        %p284 = pneg %p147
      $region30: #{block_forward.1} parent=11 // pred_check_branch
        %286 = sbr.rel (%p284) target = $region32
      $region31: #{block_forward.1} parent=11 // pred_region
        _
      $region32: #{block_forward.1} parent=11 // pred_fallthru
        _
      // Predicated region
      $region33: #{block_forward.1} parent=11 // pred_check
        %p287 = pneg %p168
      $region34: #{block_forward.1} parent=11 // pred_check_branch
        %289 = sbr.rel (%p287) target = $region36
      $region35: #{block_forward.1} parent=11 // pred_region
        _
      $region36: #{block_forward.1} parent=11 // pred_fallthru
        _
      // Predicated region
      $region37: #{block_forward.1} parent=11 // pred_check
        %p290 = pneg %p189
      $region38: #{block_forward.1} parent=11 // pred_check_branch
        %292 = sbr.rel (%p290) target = $region40
      $region39: #{block_forward.1} parent=11 // pred_region
        _
      $region40: #{block_forward.1} parent=11 // pred_fallthru
        _
      // Predicated region
      $region41: #{block_forward.1} parent=11 // pred_check
        %p293 = pneg %p210
      $region42: #{block_forward.1} parent=11 // pred_check_branch
        %295 = sbr.rel (%p293) target = $region44
      $region43: #{block_forward.1} parent=11 // pred_region
        _
      $region44: #{block_forward.1} parent=11 // pred_fallthru
        _
      // Predicated region
      $region45: #{block_forward.1} parent=11 // pred_check
        %p296 = pneg %p231
      $region46: #{block_forward.1} parent=11 // pred_check_branch
        %298 = sbr.rel (%p296) target = $region48
      $region47: #{block_forward.1} parent=11 // pred_region
        _
      $region48: #{block_forward.1} parent=11 // pred_fallthru
        _
    $region12: #{block_forward.1} parent=5 // pred_fallthru
      _
    %p299 = scmp.lt.s32.totalorder %s16, 2
    // Predicated region
    $region49: #{block_forward.1} parent=5 // pred_check
      %p300 = pneg %p299
    $region50: #{block_forward.1} parent=5 // pred_check_branch
      %302 = sbr.rel (%p300) target = $region52
    $region51: #{block_forward.1} parent=5 // pred_region
      // Predicated region
      $region53: #{block_forward.1} parent=51 // pred_check
        %p303 = pneg %p36
      $region54: #{block_forward.1} parent=51 // pred_check_branch
        %305 = sbr.rel (%p303) target = $region56
      $region55: #{block_forward.1} parent=51 // pred_region
        %p306 = scmp.lt.s32.totalorder %s16, 1
        %s307 = scalar_select %p306, %s16, 1
        %s308 = smul.addr %s307, 2
        %s309 = smul.addr %s308, 8
        %s310 = scalar_lea.vmem %s0, %s309
      $region56: #{block_forward.1} parent=51 // pred_fallthru
        _
    $region52: #{block_forward.1} parent=5 // pred_fallthru
      _
    %p311 = scmp.le.s32.totalorder 1, %s16
    %p312 = scmp.lt.s32.totalorder %s16, 3
    %p313 = pnand %p311, %p312
    %p314 = pneg %p313
    // Predicated region
    $region57: #{block_forward.1} parent=5 // pred_check
      _
    $region58: #{block_forward.1} parent=5 // pred_check_branch
      %316 = sbr.rel (%p313) target = $region60
    $region59: #{block_forward.1} parent=5 // pred_region
      %s317 = ssub.s32 %s16, 1
      %p318 = scmp.lt.s32.totalorder %s21, 1
      %s319 = scalar_select %p318, %s21, 1
      %s320 = smul.addr %s319, 2
      %s321 = smul.addr %s320, 8
      %s322 = scalar_lea.vmem %s0, %s321
      %p323 = pneg %p42
      %p324 = pneg %p39
      %p325 = pneg %p63
      %p326 = pneg %p60
      %p327 = pneg %p84
      %p328 = pneg %p81
      %p329 = pneg %p105
      %p330 = pneg %p102
      %p331 = pneg %p126
      %p332 = pneg %p123
      %p333 = pneg %p147
      %p334 = pneg %p144
      %p335 = pneg %p168
      %p336 = pneg %p165
      %p337 = pneg %p189
      %p338 = pneg %p186
      %p339 = pneg %p210
      %p340 = pneg %p207
      %p341 = pneg %p231
      %p342 = pneg %p228
      %p343 = pneg %p257
      %p344 = pneg %p254
      %p345 = scmp.lt.s32.totalorder %s21, 1
      %s346 = scalar_select %p345, %s21, 1
      %s347 = smul.addr %s346, 2
      %s348 = smul.addr %s347, 8
      %s349 = scalar_lea.vmem %s10, %s348
      %p350 = scmp.lt.s32.totalorder %s21, 1
      %s351 = scalar_select %p350, %s21, 1
      %s352 = smul.addr %s351, 2
      %s353 = smul.addr %s352, 8
      %s354 = scalar_lea.vmem %s0, %s353
      %p355 = scmp.lt.s32.totalorder %s21, 1
      %s356 = scalar_select %p355, %s21, 1
      %s357 = smul.addr %s356, 2
      %s358 = smul.addr %s357, 8
      %s359 = scalar_lea.vmem %s10, %s358
      %vm360 = vcmask 523264
      %361 = vst.msk [vmem:[#allocation2] sm:$0xff] %vm360, 0.0
      %362 = vst.msk [vmem:[#allocation2 + $0x8] sm:$0xff] %vm360, 0.0
      %vm363 = vcmask 517120
      %364 = vst.msk [vmem:[#allocation2 + $0x10] sm:$0x3] %vm363, 0.0
      %v365 = vld [vmem:[%s354] sm:$0xff]
      %v366 = vld [vmem:[%s354 + $0x8] sm:$0xff]
      %v367 = vld [vmem:[%s2] sm:$0x1]
      %v368 = vld [vmem:[%s3] sm:$0x1]
      %369 = vst.msk [vmem:[#allocation2 + $0x1] sm:$0xff] %vm360, %v365
      %370 = vst.msk [vmem:[#allocation2 + $0x9] sm:$0xff] %vm360, %v366
      %v371 = vld [vmem:[#allocation2] sm:$0xff]
      %v372 = vld [vmem:[#allocation2 + $0x8] sm:$0xff]
      %v373 = vld [vmem:[%s1] sm:$0xff]
      %v374 = vld [vmem:[%s1 + $0x8] sm:$0xff]
      %v375 = vld [vmem:[%s1 + $0x10] sm:$0xff]
      %v376 = vld [vmem:[%s1 + $0x18] sm:$0xff]
      %v377 = vld [vmem:[%s1 + $0x20] sm:$0xff]
      %v378 = vld [vmem:[%s1 + $0x28] sm:$0xff]
      %v379 = vld [vmem:[%s1 + $0x30] sm:$0xff]
      %v380 = vld [vmem:[%s1 + $0x38] sm:$0xff]
      %v381 = vld [vmem:[#allocation2 + $0x1] sm:$0xff]
      %v382 = vld [vmem:[#allocation2 + $0x9] sm:$0xff]
      %s383 = scalar_lea.vmem %s1, 64
      %v384 = vld [vmem:[%s383] sm:$0xff]
      %v385 = vld [vmem:[%s383 + $0x8] sm:$0xff]
      %v386 = vld [vmem:[%s383 + $0x10] sm:$0xff]
      %v387 = vld [vmem:[%s383 + $0x18] sm:$0xff]
      %v388 = vld [vmem:[%s383 + $0x20] sm:$0xff]
      %v389 = vld [vmem:[%s383 + $0x28] sm:$0xff]
      %v390 = vld [vmem:[%s383 + $0x30] sm:$0xff]
      %v391 = vld [vmem:[%s383 + $0x38] sm:$0xff]
      %v393 = vsel %vm360, %v381, 0
      %v396 = vsel %vm360, %v382, 0
      %398 = vmatprep.subr.mxu0 0.0
      %399 = vmatpush1.msra.mxu0 %v384
      %400 = vmatprep.subr.mxu0 0.0
      %401 = vmatpush1.msra.mxu0 %v385
      %402 = vmatprep.subr.mxu0 0.0
      %403 = vmatpush1.msra.mxu0 %v386
      %404 = vmatprep.subr.mxu0 0.0
      %405 = vmatpush1.msra.mxu0 %v387
      %406 = vmatprep.subr.mxu0 0.0
      %407 = vmatpush1.msra.mxu0 %v388
      %408 = vmatprep.subr.mxu0 0.0
      %409 = vmatpush1.msra.mxu0 %v389
      %410 = vmatprep.subr.mxu0 0.0
      %411 = vmatpush1.msra.mxu0 %v390
      %412 = vmatprep.subr.mxu0 0.0
      %413 = vmatpush1.msra.mxu0 %v391
      %414 = vmatprep.subr.mxu0 0.0
      %415 = vmatpush1.msra.mxu0 0.0
      %416 = vmatprep.subr.mxu0 0.0
      %417 = vmatpush1.msra.mxu0 0.0
      %418 = vmatprep.subr.mxu0 0.0
      %419 = vmatpush1.msra.mxu0 0.0
      %420 = vmatprep.subr.mxu0 0.0
      %421 = vmatpush1.msra.mxu0 0.0
      %422 = vmatprep.subr.mxu0 0.0
      %423 = vmatpush1.msra.mxu0 0.0
      %424 = vmatprep.subr.mxu0 0.0
      %425 = vmatpush1.msra.mxu0 0.0
      %426 = vmatprep.subr.mxu0 0.0
      %427 = vmatpush1.msra.mxu0 0.0
      %428 = vmatprep.subr.mxu0 0.0
      %429 = vmatpush1.msra.mxu0 0.0
      %430 = vmatprep.subr.mxu0 0.0
      %431 = vmatpush1.msra.mxu0 0.0
      %432 = vmatprep.subr.mxu0 0.0
      %433 = vmatpush1.msra.mxu0 0.0
      %434 = vmatprep.subr.mxu0 0.0
      %435 = vmatpush1.msra.mxu0 0.0
      %436 = vmatprep.subr.mxu0 0.0
      %437 = vmatpush1.msra.mxu0 0.0
      %438 = vmatprep.subr.mxu0 0.0
      %439 = vmatpush1.msra.mxu0 0.0
      %440 = vmatprep.subr.mxu0 0.0
      %441 = vmatpush1.msra.mxu0 0.0
      %442 = vmatprep.subr.mxu0 0.0
      %443 = vmatpush1.msra.mxu0 0.0
      %444 = vmatprep.subr.mxu0 0.0
      %445 = vmatpush1.msra.mxu0 0.0
      %446 = vmatprep.subr.mxu0 0.0
      %447 = vmatpush1.msra.mxu0 0.0
      %448 = vmatprep.subr.mxu0 0.0
      %449 = vmatpush1.msra.mxu0 0.0
      %450 = vmatprep.subr.mxu0 0.0
      %451 = vmatpush1.msra.mxu0 0.0
      %452 = vmatprep.subr.mxu0 0.0
      %453 = vmatpush1.msra.mxu0 0.0
      %454 = vmatprep.subr.mxu0 0.0
      %455 = vmatpush1.msra.mxu0 0.0
      %456 = vmatprep.subr.mxu0 0.0
      %457 = vmatpush1.msra.mxu0 0.0
      %458 = vmatprep.subr.mxu0 0.0
      %459 = vmatpush1.msra.mxu0 0.0
      %460 = vmatprep.subr.mxu0 0.0
      %461 = vmatpush1.msra.mxu0 0.0
      %462 = vmatprep.mubr.f32.mxu0 0.0
      %463 = vmatmul.mubr.f32.gmra.mrb[0].mxu0 %v393
      %v464 = vpop.f32.mrb[0].mxu0
      %v465 = vadd.f32 0.0, %v464
      %v466 = vpop.f32.mrb[0].mxu0
      %467 = vmatprep.mubr.f32.mxu0 0.0
      %468 = vmatmul.mubr.f32.gmra.mrb[0].mxu0 %v396
      %v469 = vpop.f32.mrb[0].mxu0
      %v470 = vadd.f32 0.0, %v469
      %v471 = vpop.f32.mrb[0].mxu0
      %472 = vdwg.mxu0
      %v474 = vsel %vm360, %v371, 0
      %v477 = vsel %vm360, %v372, 0
      %479 = vmatprep.subr.mxu0 0.0
      %480 = vmatpush1.msra.mxu0 %v373
      %481 = vmatprep.subr.mxu0 0.0
      %482 = vmatpush1.msra.mxu0 %v374
      %483 = vmatprep.subr.mxu0 0.0
      %484 = vmatpush1.msra.mxu0 %v375
      %485 = vmatprep.subr.mxu0 0.0
      %486 = vmatpush1.msra.mxu0 %v376
      %487 = vmatprep.subr.mxu0 0.0
      %488 = vmatpush1.msra.mxu0 %v377
      %489 = vmatprep.subr.mxu0 0.0
      %490 = vmatpush1.msra.mxu0 %v378
      %491 = vmatprep.subr.mxu0 0.0
      %492 = vmatpush1.msra.mxu0 %v379
      %493 = vmatprep.subr.mxu0 0.0
      %494 = vmatpush1.msra.mxu0 %v380
      %495 = vmatprep.subr.mxu0 0.0
      %496 = vmatpush1.msra.mxu0 0.0
      %497 = vmatprep.subr.mxu0 0.0
      %498 = vmatpush1.msra.mxu0 0.0
      %499 = vmatprep.subr.mxu0 0.0
      %500 = vmatpush1.msra.mxu0 0.0
      %501 = vmatprep.subr.mxu0 0.0
      %502 = vmatpush1.msra.mxu0 0.0
      %503 = vmatprep.subr.mxu0 0.0
      %504 = vmatpush1.msra.mxu0 0.0
      %505 = vmatprep.subr.mxu0 0.0
      %506 = vmatpush1.msra.mxu0 0.0
      %507 = vmatprep.subr.mxu0 0.0
      %508 = vmatpush1.msra.mxu0 0.0
      %509 = vmatprep.subr.mxu0 0.0
      %510 = vmatpush1.msra.mxu0 0.0
      %511 = vmatprep.subr.mxu0 0.0
      %512 = vmatpush1.msra.mxu0 0.0
      %513 = vmatprep.subr.mxu0 0.0
      %514 = vmatpush1.msra.mxu0 0.0
      %515 = vmatprep.subr.mxu0 0.0
      %516 = vmatpush1.msra.mxu0 0.0
      %517 = vmatprep.subr.mxu0 0.0
      %518 = vmatpush1.msra.mxu0 0.0
      %519 = vmatprep.subr.mxu0 0.0
      %520 = vmatpush1.msra.mxu0 0.0
      %521 = vmatprep.subr.mxu0 0.0
      %522 = vmatpush1.msra.mxu0 0.0
      %523 = vmatprep.subr.mxu0 0.0
      %524 = vmatpush1.msra.mxu0 0.0
      %525 = vmatprep.subr.mxu0 0.0
      %526 = vmatpush1.msra.mxu0 0.0
      %527 = vmatprep.subr.mxu0 0.0
      %528 = vmatpush1.msra.mxu0 0.0
      %529 = vmatprep.subr.mxu0 0.0
      %530 = vmatpush1.msra.mxu0 0.0
      %531 = vmatprep.subr.mxu0 0.0
      %532 = vmatpush1.msra.mxu0 0.0
      %533 = vmatprep.subr.mxu0 0.0
      %534 = vmatpush1.msra.mxu0 0.0
      %535 = vmatprep.subr.mxu0 0.0
      %536 = vmatpush1.msra.mxu0 0.0
      %537 = vmatprep.subr.mxu0 0.0
      %538 = vmatpush1.msra.mxu0 0.0
      %539 = vmatprep.subr.mxu0 0.0
      %540 = vmatpush1.msra.mxu0 0.0
      %541 = vmatprep.subr.mxu0 0.0
      %542 = vmatpush1.msra.mxu0 0.0
      %543 = vmatprep.mubr.f32.mxu0 0.0
      %544 = vmatmul.mubr.f32.gmra.mrb[0].mxu0 %v474
      %v545 = vpop.f32.mrb[0].mxu0
      %v546 = vadd.f32 %v465, %v545
      %v547 = vpop.f32.mrb[0].mxu0
      %548 = vmatprep.mubr.f32.mxu0 0.0
      %549 = vmatmul.mubr.f32.gmra.mrb[0].mxu0 %v477
      %v550 = vpop.f32.mrb[0].mxu0
      %v551 = vadd.f32 %v470, %v550
      %v552 = vpop.f32.mrb[0].mxu0
      %553 = vdwg.mxu0
      %v554 = vld [vmem:[#allocation2 + $0x2] sm:$0xff]
      %v555 = vld [vmem:[#allocation2 + $0xa] sm:$0xff]
      %s556 = scalar_lea.vmem %s1, 128
      %v557 = vld [vmem:[%s556] sm:$0xff]
      %v558 = vld [vmem:[%s556 + $0x8] sm:$0xff]
      %v559 = vld [vmem:[%s556 + $0x10] sm:$0xff]
      %v560 = vld [vmem:[%s556 + $0x18] sm:$0xff]
      %v561 = vld [vmem:[%s556 + $0x20] sm:$0xff]
      %v562 = vld [vmem:[%s556 + $0x28] sm:$0xff]
      %v563 = vld [vmem:[%s556 + $0x30] sm:$0xff]
      %v564 = vld [vmem:[%s556 + $0x38] sm:$0xff]
      %v566 = vsel %vm360, %v554, 0
      %v569 = vsel %vm360, %v555, 0
      %571 = vmatprep.subr.mxu0 0.0
      %572 = vmatpush1.msra.mxu0 %v557
      %573 = vmatprep.subr.mxu0 0.0
      %574 = vmatpush1.msra.mxu0 %v558
      %575 = vmatprep.subr.mxu0 0.0
      %576 = vmatpush1.msra.mxu0 %v559
      %577 = vmatprep.subr.mxu0 0.0
      %578 = vmatpush1.msra.mxu0 %v560
      %579 = vmatprep.subr.mxu0 0.0
      %580 = vmatpush1.msra.mxu0 %v561
      %581 = vmatprep.subr.mxu0 0.0
      %582 = vmatpush1.msra.mxu0 %v562
      %583 = vmatprep.subr.mxu0 0.0
      %584 = vmatpush1.msra.mxu0 %v563
      %585 = vmatprep.subr.mxu0 0.0
      %586 = vmatpush1.msra.mxu0 %v564
      %587 = vmatprep.subr.mxu0 0.0
      %588 = vmatpush1.msra.mxu0 0.0
      %589 = vmatprep.subr.mxu0 0.0
      %590 = vmatpush1.msra.mxu0 0.0
      %591 = vmatprep.subr.mxu0 0.0
      %592 = vmatpush1.msra.mxu0 0.0
      %593 = vmatprep.subr.mxu0 0.0
      %594 = vmatpush1.msra.mxu0 0.0
      %595 = vmatprep.subr.mxu0 0.0
      %596 = vmatpush1.msra.mxu0 0.0
      %597 = vmatprep.subr.mxu0 0.0
      %598 = vmatpush1.msra.mxu0 0.0
      %599 = vmatprep.subr.mxu0 0.0
      %600 = vmatpush1.msra.mxu0 0.0
      %601 = vmatprep.subr.mxu0 0.0
      %602 = vmatpush1.msra.mxu0 0.0
      %603 = vmatprep.subr.mxu0 0.0
      %604 = vmatpush1.msra.mxu0 0.0
      %605 = vmatprep.subr.mxu0 0.0
      %606 = vmatpush1.msra.mxu0 0.0
      %607 = vmatprep.subr.mxu0 0.0
      %608 = vmatpush1.msra.mxu0 0.0
      %609 = vmatprep.subr.mxu0 0.0
      %610 = vmatpush1.msra.mxu0 0.0
      %611 = vmatprep.subr.mxu0 0.0
      %612 = vmatpush1.msra.mxu0 0.0
      %613 = vmatprep.subr.mxu0 0.0
      %614 = vmatpush1.msra.mxu0 0.0
      %615 = vmatprep.subr.mxu0 0.0
      %616 = vmatpush1.msra.mxu0 0.0
      %617 = vmatprep.subr.mxu0 0.0
      %618 = vmatpush1.msra.mxu0 0.0
      %619 = vmatprep.subr.mxu0 0.0
      %620 = vmatpush1.msra.mxu0 0.0
      %621 = vmatprep.subr.mxu0 0.0
      %622 = vmatpush1.msra.mxu0 0.0
      %623 = vmatprep.subr.mxu0 0.0
      %624 = vmatpush1.msra.mxu0 0.0
      %625 = vmatprep.subr.mxu0 0.0
      %626 = vmatpush1.msra.mxu0 0.0
      %627 = vmatprep.subr.mxu0 0.0
      %628 = vmatpush1.msra.mxu0 0.0
      %629 = vmatprep.subr.mxu0 0.0
      %630 = vmatpush1.msra.mxu0 0.0
      %631 = vmatprep.subr.mxu0 0.0
      %632 = vmatpush1.msra.mxu0 0.0
      %633 = vmatprep.subr.mxu0 0.0
      %634 = vmatpush1.msra.mxu0 0.0
      %635 = vmatprep.mubr.f32.mxu0 0.0
      %636 = vmatmul.mubr.f32.gmra.mrb[0].mxu0 %v566
      %v637 = vpop.f32.mrb[0].mxu0
      %v638 = vadd.f32 0.0, %v637
      %v639 = vpop.f32.mrb[0].mxu0
      %640 = vmatprep.mubr.f32.mxu0 0.0
      %641 = vmatmul.mubr.f32.gmra.mrb[0].mxu0 %v569
      %v642 = vpop.f32.mrb[0].mxu0
      %v643 = vadd.f32 0.0, %v642
      %v644 = vpop.f32.mrb[0].mxu0
      %645 = vdwg.mxu0
      %v646 = vadd.f32 %v546, %v638
      %v647 = vadd.f32 %v551, %v643
      %v649 = vlaneseq
      %v650 = vshrl.u32 %v649, 7
      %v651 = vsub.s32 0, %v650
      %v652 = vrot.slane %v367, %v651
      %v654 = vmul.f32 %v646, %v652
      %v655 = vmul.f32 %v647, %v652
      %v657 = vlaneseq
      %v658 = vshrl.u32 %v657, 7
      %v659 = vsub.s32 0, %v658
      %v660 = vrot.slane %v368, %v659
      %v662 = vadd.f32 %v654, %v660
      %v663 = vadd.f32 %v655, %v660
      %vm664 = vcmp.ge.f32.partialorder %v662, 0.0
      %vm665 = vcmp.ge.f32.partialorder %v663, 0.0
      %v666 = vmul.f32 %v662, 0.1
      %v667 = vmul.f32 %v663, 0.1
      %v668 = vsel %vm664, %v662, %v666
      %v669 = vsel %vm665, %v663, %v667
      %v670 = vld [vmem:[%s4] sm:$0xff]
      %v671 = vld [vmem:[%s4 + $0x8] sm:$0xff]
      %v672 = vld [vmem:[%s4 + $0x10] sm:$0xff]
      %v673 = vld [vmem:[%s4 + $0x18] sm:$0xff]
      %v674 = vld [vmem:[%s4 + $0x20] sm:$0xff]
      %v675 = vld [vmem:[%s4 + $0x28] sm:$0xff]
      %v676 = vld [vmem:[%s4 + $0x30] sm:$0xff]
      %v677 = vld [vmem:[%s4 + $0x38] sm:$0xff]
      %v678 = vld [vmem:[%s4 + $0x40] sm:$0xff]
      %v679 = vld [vmem:[%s4 + $0x48] sm:$0xff]
      %v680 = vld [vmem:[%s4 + $0x50] sm:$0xff]
      %v681 = vld [vmem:[%s4 + $0x58] sm:$0xff]
      %v682 = vld [vmem:[%s4 + $0x60] sm:$0xff]
      %v683 = vld [vmem:[%s4 + $0x68] sm:$0xff]
      %v684 = vld [vmem:[%s4 + $0x70] sm:$0xff]
      %v685 = vld [vmem:[%s4 + $0x78] sm:$0xff]
      %686 = vmatprep.subr.mxu0 0.0
      %687 = vmatpush1.msra.mxu0 %v670
      %688 = vmatprep.subr.mxu0 0.0
      %689 = vmatpush1.msra.mxu0 %v671
      %690 = vmatprep.subr.mxu0 0.0
      %691 = vmatpush1.msra.mxu0 %v672
      %692 = vmatprep.subr.mxu0 0.0
      %693 = vmatpush1.msra.mxu0 %v673
      %694 = vmatprep.subr.mxu0 0.0
      %695 = vmatpush1.msra.mxu0 %v674
      %696 = vmatprep.subr.mxu0 0.0
      %697 = vmatpush1.msra.mxu0 %v675
      %698 = vmatprep.subr.mxu0 0.0
      %699 = vmatpush1.msra.mxu0 %v676
      %700 = vmatprep.subr.mxu0 0.0
      %701 = vmatpush1.msra.mxu0 %v677
      %702 = vmatprep.subr.mxu0 0.0
      %703 = vmatpush1.msra.mxu0 %v678
      %704 = vmatprep.subr.mxu0 0.0
      %705 = vmatpush1.msra.mxu0 %v679
      %706 = vmatprep.subr.mxu0 0.0
      %707 = vmatpush1.msra.mxu0 %v680
      %708 = vmatprep.subr.mxu0 0.0
      %709 = vmatpush1.msra.mxu0 %v681
      %710 = vmatprep.subr.mxu0 0.0
      %711 = vmatpush1.msra.mxu0 %v682
      %712 = vmatprep.subr.mxu0 0.0
      %713 = vmatpush1.msra.mxu0 %v683
      %714 = vmatprep.subr.mxu0 0.0
      %715 = vmatpush1.msra.mxu0 %v684
      %716 = vmatprep.subr.mxu0 0.0
      %717 = vmatpush1.msra.mxu0 %v685
      %718 = vmatprep.subr.mxu0 0.0
      %719 = vmatpush1.msra.mxu0 0.0
      %720 = vmatprep.subr.mxu0 0.0
      %721 = vmatpush1.msra.mxu0 0.0
      %722 = vmatprep.subr.mxu0 0.0
      %723 = vmatpush1.msra.mxu0 0.0
      %724 = vmatprep.subr.mxu0 0.0
      %725 = vmatpush1.msra.mxu0 0.0
      %726 = vmatprep.subr.mxu0 0.0
      %727 = vmatpush1.msra.mxu0 0.0
      %728 = vmatprep.subr.mxu0 0.0
      %729 = vmatpush1.msra.mxu0 0.0
      %730 = vmatprep.subr.mxu0 0.0
      %731 = vmatpush1.msra.mxu0 0.0
      %732 = vmatprep.subr.mxu0 0.0
      %733 = vmatpush1.msra.mxu0 0.0
      %734 = vmatprep.subr.mxu0 0.0
      %735 = vmatpush1.msra.mxu0 0.0
      %736 = vmatprep.subr.mxu0 0.0
      %737 = vmatpush1.msra.mxu0 0.0
      %738 = vmatprep.subr.mxu0 0.0
      %739 = vmatpush1.msra.mxu0 0.0
      %740 = vmatprep.subr.mxu0 0.0
      %741 = vmatpush1.msra.mxu0 0.0
      %742 = vmatprep.subr.mxu0 0.0
      %743 = vmatpush1.msra.mxu0 0.0
      %744 = vmatprep.subr.mxu0 0.0
      %745 = vmatpush1.msra.mxu0 0.0
      %746 = vmatprep.subr.mxu0 0.0
      %747 = vmatpush1.msra.mxu0 0.0
      %748 = vmatprep.subr.mxu0 0.0
      %749 = vmatpush1.msra.mxu0 0.0
      %750 = vmatprep.mubr.f32.mxu0 0.0
      %751 = vmatmul.mubr.f32.gmra.mrb[0].mxu0 %v668
      %v752 = vpop.f32.mrb[0].mxu0
      %v753 = vadd.f32 0.0, %v752
      %v754 = vpop.f32.mrb[0].mxu0
      %755 = vmatprep.mubr.f32.mxu0 0.0
      %756 = vmatmul.mubr.f32.gmra.mrb[0].mxu0 %v669
      %v757 = vpop.f32.mrb[0].mxu0
      %v758 = vadd.f32 0.0, %v757
      %v759 = vpop.f32.mrb[0].mxu0
      %760 = vdwg.mxu0
      %v761 = vld [vmem:[%s5] sm:$0x1]
      %v763 = vlaneseq
      %v764 = vshrl.u32 %v763, 7
      %v765 = vsub.s32 0, %v764
      %v766 = vrot.slane %v761, %v765
      %v768 = vmul.f32 %v753, %v766
      %v769 = vmul.f32 %v758, %v766
      %v770 = vld [vmem:[%s6] sm:$0x1]
      %v772 = vlaneseq
      %v773 = vshrl.u32 %v772, 7
      %v774 = vsub.s32 0, %v773
      %v775 = vrot.slane %v770, %v774
      %v777 = vadd.f32 %v768, %v775
      %v778 = vadd.f32 %v769, %v775
      %vm779 = vcmp.ge.f32.partialorder %v777, 0.0
      %vm780 = vcmp.ge.f32.partialorder %v778, 0.0
      %v781 = vmul.f32 %v777, 0.1
      %v782 = vmul.f32 %v778, 0.1
      %v783 = vsel %vm779, %v777, %v781
      %v784 = vsel %vm780, %v778, %v782
      %v785 = vld [vmem:[%s8] sm:$0x1]
      %v786 = vld [vmem:[%s9] sm:$0x1]
      %787 = vst.msk [vmem:[#allocation2 + $0x1] sm:$0xff] %vm360, %v783
      %788 = vst.msk [vmem:[#allocation2 + $0x9] sm:$0xff] %vm360, %v784
      %v789 = vld [vmem:[#allocation2] sm:$0xff]
      %v790 = vld [vmem:[#allocation2 + $0x8] sm:$0xff]
      %v791 = vld [vmem:[%s7] sm:$0xff]
      %v792 = vld [vmem:[%s7 + $0x8] sm:$0xff]
      %v793 = vld [vmem:[%s7 + $0x10] sm:$0xff]
      %v794 = vld [vmem:[%s7 + $0x18] sm:$0xff]
      %v795 = vld [vmem:[%s7 + $0x20] sm:$0xff]
      %v796 = vld [vmem:[%s7 + $0x28] sm:$0xff]
      %v797 = vld [vmem:[%s7 + $0x30] sm:$0xff]
      %v798 = vld [vmem:[%s7 + $0x38] sm:$0xff]
      %v799 = vld [vmem:[#allocation2 + $0x1] sm:$0xff]
      %v800 = vld [vmem:[#allocation2 + $0x9] sm:$0xff]
      %s801 = scalar_lea.vmem %s7, 64
      %v802 = vld [vmem:[%s801] sm:$0xff]
      %v803 = vld [vmem:[%s801 + $0x8] sm:$0xff]
      %v804 = vld [vmem:[%s801 + $0x10] sm:$0xff]
      %v805 = vld [vmem:[%s801 + $0x18] sm:$0xff]
      %v806 = vld [vmem:[%s801 + $0x20] sm:$0xff]
      %v807 = vld [vmem:[%s801 + $0x28] sm:$0xff]
      %v808 = vld [vmem:[%s801 + $0x30] sm:$0xff]
      %v809 = vld [vmem:[%s801 + $0x38] sm:$0xff]
      %v811 = vsel %vm360, %v799, 0
      %v814 = vsel %vm360, %v800, 0
      %816 = vmatprep.subr.mxu0 0.0
      %817 = vmatpush1.msra.mxu0 %v802
      %818 = vmatprep.subr.mxu0 0.0
      %819 = vmatpush1.msra.mxu0 %v803
      %820 = vmatprep.subr.mxu0 0.0
      %821 = vmatpush1.msra.mxu0 %v804
      %822 = vmatprep.subr.mxu0 0.0
      %823 = vmatpush1.msra.mxu0 %v805
      %824 = vmatprep.subr.mxu0 0.0
      %825 = vmatpush1.msra.mxu0 %v806
      %826 = vmatprep.subr.mxu0 0.0
      %827 = vmatpush1.msra.mxu0 %v807
      %828 = vmatprep.subr.mxu0 0.0
      %829 = vmatpush1.msra.mxu0 %v808
      %830 = vmatprep.subr.mxu0 0.0
      %831 = vmatpush1.msra.mxu0 %v809
      %832 = vmatprep.subr.mxu0 0.0
      %833 = vmatpush1.msra.mxu0 0.0
      %834 = vmatprep.subr.mxu0 0.0
      %835 = vmatpush1.msra.mxu0 0.0
      %836 = vmatprep.subr.mxu0 0.0
      %837 = vmatpush1.msra.mxu0 0.0
      %838 = vmatprep.subr.mxu0 0.0
      %839 = vmatpush1.msra.mxu0 0.0
      %840 = vmatprep.subr.mxu0 0.0
      %841 = vmatpush1.msra.mxu0 0.0
      %842 = vmatprep.subr.mxu0 0.0
      %843 = vmatpush1.msra.mxu0 0.0
      %844 = vmatprep.subr.mxu0 0.0
      %845 = vmatpush1.msra.mxu0 0.0
      %846 = vmatprep.subr.mxu0 0.0
      %847 = vmatpush1.msra.mxu0 0.0
      %848 = vmatprep.subr.mxu0 0.0
      %849 = vmatpush1.msra.mxu0 0.0
      %850 = vmatprep.subr.mxu0 0.0
      %851 = vmatpush1.msra.mxu0 0.0
      %852 = vmatprep.subr.mxu0 0.0
      %853 = vmatpush1.msra.mxu0 0.0
      %854 = vmatprep.subr.mxu0 0.0
      %855 = vmatpush1.msra.mxu0 0.0
      %856 = vmatprep.subr.mxu0 0.0
      %857 = vmatpush1.msra.mxu0 0.0
      %858 = vmatprep.subr.mxu0 0.0
      %859 = vmatpush1.msra.mxu0 0.0
      %860 = vmatprep.subr.mxu0 0.0
      %861 = vmatpush1.msra.mxu0 0.0
      %862 = vmatprep.subr.mxu0 0.0
      %863 = vmatpush1.msra.mxu0 0.0
      %864 = vmatprep.subr.mxu0 0.0
      %865 = vmatpush1.msra.mxu0 0.0
      %866 = vmatprep.subr.mxu0 0.0
      %867 = vmatpush1.msra.mxu0 0.0
      %868 = vmatprep.subr.mxu0 0.0
      %869 = vmatpush1.msra.mxu0 0.0
      %870 = vmatprep.subr.mxu0 0.0
      %871 = vmatpush1.msra.mxu0 0.0
      %872 = vmatprep.subr.mxu0 0.0
      %873 = vmatpush1.msra.mxu0 0.0
      %874 = vmatprep.subr.mxu0 0.0
      %875 = vmatpush1.msra.mxu0 0.0
      %876 = vmatprep.subr.mxu0 0.0
      %877 = vmatpush1.msra.mxu0 0.0
      %878 = vmatprep.subr.mxu0 0.0
      %879 = vmatpush1.msra.mxu0 0.0
      %880 = vmatprep.mubr.f32.mxu0 0.0
      %881 = vmatmul.mubr.f32.gmra.mrb[0].mxu0 %v811
      %v882 = vpop.f32.mrb[0].mxu0
      %v883 = vadd.f32 0.0, %v882
      %v884 = vpop.f32.mrb[0].mxu0
      %885 = vmatprep.mubr.f32.mxu0 0.0
      %886 = vmatmul.mubr.f32.gmra.mrb[0].mxu0 %v814
      %v887 = vpop.f32.mrb[0].mxu0
      %v888 = vadd.f32 0.0, %v887
      %v889 = vpop.f32.mrb[0].mxu0
      %890 = vdwg.mxu0
      %v892 = vsel %vm360, %v789, 0
      %v895 = vsel %vm360, %v790, 0
      %897 = vmatprep.subr.mxu0 0.0
      %898 = vmatpush1.msra.mxu0 %v791
      %899 = vmatprep.subr.mxu0 0.0
      %900 = vmatpush1.msra.mxu0 %v792
      %901 = vmatprep.subr.mxu0 0.0
      %902 = vmatpush1.msra.mxu0 %v793
      %903 = vmatprep.subr.mxu0 0.0
      %904 = vmatpush1.msra.mxu0 %v794
      %905 = vmatprep.subr.mxu0 0.0
      %906 = vmatpush1.msra.mxu0 %v795
      %907 = vmatprep.subr.mxu0 0.0
      %908 = vmatpush1.msra.mxu0 %v796
      %909 = vmatprep.subr.mxu0 0.0
      %910 = vmatpush1.msra.mxu0 %v797
      %911 = vmatprep.subr.mxu0 0.0
      %912 = vmatpush1.msra.mxu0 %v798
      %913 = vmatprep.subr.mxu0 0.0
      %914 = vmatpush1.msra.mxu0 0.0
      %915 = vmatprep.subr.mxu0 0.0
      %916 = vmatpush1.msra.mxu0 0.0
      %917 = vmatprep.subr.mxu0 0.0
      %918 = vmatpush1.msra.mxu0 0.0
      %919 = vmatprep.subr.mxu0 0.0
      %920 = vmatpush1.msra.mxu0 0.0
      %921 = vmatprep.subr.mxu0 0.0
      %922 = vmatpush1.msra.mxu0 0.0
      %923 = vmatprep.subr.mxu0 0.0
      %924 = vmatpush1.msra.mxu0 0.0
      %925 = vmatprep.subr.mxu0 0.0
      %926 = vmatpush1.msra.mxu0 0.0
      %927 = vmatprep.subr.mxu0 0.0
      %928 = vmatpush1.msra.mxu0 0.0
      %929 = vmatprep.subr.mxu0 0.0
      %930 = vmatpush1.msra.mxu0 0.0
      %931 = vmatprep.subr.mxu0 0.0
      %932 = vmatpush1.msra.mxu0 0.0
      %933 = vmatprep.subr.mxu0 0.0
      %934 = vmatpush1.msra.mxu0 0.0
      %935 = vmatprep.subr.mxu0 0.0
      %936 = vmatpush1.msra.mxu0 0.0
      %937 = vmatprep.subr.mxu0 0.0
      %938 = vmatpush1.msra.mxu0 0.0
      %939 = vmatprep.subr.mxu0 0.0
      %940 = vmatpush1.msra.mxu0 0.0
      %941 = vmatprep.subr.mxu0 0.0
      %942 = vmatpush1.msra.mxu0 0.0
      %943 = vmatprep.subr.mxu0 0.0
      %944 = vmatpush1.msra.mxu0 0.0
      %945 = vmatprep.subr.mxu0 0.0
      %946 = vmatpush1.msra.mxu0 0.0
      %947 = vmatprep.subr.mxu0 0.0
      %948 = vmatpush1.msra.mxu0 0.0
      %949 = vmatprep.subr.mxu0 0.0
      %950 = vmatpush1.msra.mxu0 0.0
      %951 = vmatprep.subr.mxu0 0.0
      %952 = vmatpush1.msra.mxu0 0.0
      %953 = vmatprep.subr.mxu0 0.0
      %954 = vmatpush1.msra.mxu0 0.0
      %955 = vmatprep.subr.mxu0 0.0
      %956 = vmatpush1.msra.mxu0 0.0
      %957 = vmatprep.subr.mxu0 0.0
      %958 = vmatpush1.msra.mxu0 0.0
      %959 = vmatprep.subr.mxu0 0.0
      %960 = vmatpush1.msra.mxu0 0.0
      %961 = vmatprep.mubr.f32.mxu0 0.0
      %962 = vmatmul.mubr.f32.gmra.mrb[0].mxu0 %v892
      %v963 = vpop.f32.mrb[0].mxu0
      %v964 = vadd.f32 %v883, %v963
      %v965 = vpop.f32.mrb[0].mxu0
      %966 = vmatprep.mubr.f32.mxu0 0.0
      %967 = vmatmul.mubr.f32.gmra.mrb[0].mxu0 %v895
      %v968 = vpop.f32.mrb[0].mxu0
      %v969 = vadd.f32 %v888, %v968
      %v970 = vpop.f32.mrb[0].mxu0
      %971 = vdwg.mxu0
      %v972 = vld [vmem:[#allocation2 + $0x2] sm:$0xff]
      %v973 = vld [vmem:[#allocation2 + $0xa] sm:$0xff]
      %s974 = scalar_lea.vmem %s7, 128
      %v975 = vld [vmem:[%s974] sm:$0xff]
      %v976 = vld [vmem:[%s974 + $0x8] sm:$0xff]
      %v977 = vld [vmem:[%s974 + $0x10] sm:$0xff]
      %v978 = vld [vmem:[%s974 + $0x18] sm:$0xff]
      %v979 = vld [vmem:[%s974 + $0x20] sm:$0xff]
      %v980 = vld [vmem:[%s974 + $0x28] sm:$0xff]
      %v981 = vld [vmem:[%s974 + $0x30] sm:$0xff]
      %v982 = vld [vmem:[%s974 + $0x38] sm:$0xff]
      %v984 = vsel %vm360, %v972, 0
      %v987 = vsel %vm360, %v973, 0
      %989 = vmatprep.subr.mxu0 0.0
      %990 = vmatpush1.msra.mxu0 %v975
      %991 = vmatprep.subr.mxu0 0.0
      %992 = vmatpush1.msra.mxu0 %v976
      %993 = vmatprep.subr.mxu0 0.0
      %994 = vmatpush1.msra.mxu0 %v977
      %995 = vmatprep.subr.mxu0 0.0
      %996 = vmatpush1.msra.mxu0 %v978
      %997 = vmatprep.subr.mxu0 0.0
      %998 = vmatpush1.msra.mxu0 %v979
      %999 = vmatprep.subr.mxu0 0.0
      %1000 = vmatpush1.msra.mxu0 %v980
      %1001 = vmatprep.subr.mxu0 0.0
      %1002 = vmatpush1.msra.mxu0 %v981
      %1003 = vmatprep.subr.mxu0 0.0
      %1004 = vmatpush1.msra.mxu0 %v982
      %1005 = vmatprep.subr.mxu0 0.0
      %1006 = vmatpush1.msra.mxu0 0.0
      %1007 = vmatprep.subr.mxu0 0.0
      %1008 = vmatpush1.msra.mxu0 0.0
      %1009 = vmatprep.subr.mxu0 0.0
      %1010 = vmatpush1.msra.mxu0 0.0
      %1011 = vmatprep.subr.mxu0 0.0
      %1012 = vmatpush1.msra.mxu0 0.0
      %1013 = vmatprep.subr.mxu0 0.0
      %1014 = vmatpush1.msra.mxu0 0.0
      %1015 = vmatprep.subr.mxu0 0.0
      %1016 = vmatpush1.msra.mxu0 0.0
      %1017 = vmatprep.subr.mxu0 0.0
      %1018 = vmatpush1.msra.mxu0 0.0
      %1019 = vmatprep.subr.mxu0 0.0
      %1020 = vmatpush1.msra.mxu0 0.0
      %1021 = vmatprep.subr.mxu0 0.0
      %1022 = vmatpush1.msra.mxu0 0.0
      %1023 = vmatprep.subr.mxu0 0.0
      %1024 = vmatpush1.msra.mxu0 0.0
      %1025 = vmatprep.subr.mxu0 0.0
      %1026 = vmatpush1.msra.mxu0 0.0
      %1027 = vmatprep.subr.mxu0 0.0
      %1028 = vmatpush1.msra.mxu0 0.0
      %1029 = vmatprep.subr.mxu0 0.0
      %1030 = vmatpush1.msra.mxu0 0.0
      %1031 = vmatprep.subr.mxu0 0.0
      %1032 = vmatpush1.msra.mxu0 0.0
      %1033 = vmatprep.subr.mxu0 0.0
      %1034 = vmatpush1.msra.mxu0 0.0
      %1035 = vmatprep.subr.mxu0 0.0
      %1036 = vmatpush1.msra.mxu0 0.0
      %1037 = vmatprep.subr.mxu0 0.0
      %1038 = vmatpush1.msra.mxu0 0.0
      %1039 = vmatprep.subr.mxu0 0.0
      %1040 = vmatpush1.msra.mxu0 0.0
      %1041 = vmatprep.subr.mxu0 0.0
      %1042 = vmatpush1.msra.mxu0 0.0
      %1043 = vmatprep.subr.mxu0 0.0
      %1044 = vmatpush1.msra.mxu0 0.0
      %1045 = vmatprep.subr.mxu0 0.0
      %1046 = vmatpush1.msra.mxu0 0.0
      %1047 = vmatprep.subr.mxu0 0.0
      %1048 = vmatpush1.msra.mxu0 0.0
      %1049 = vmatprep.subr.mxu0 0.0
      %1050 = vmatpush1.msra.mxu0 0.0
      %1051 = vmatprep.subr.mxu0 0.0
      %1052 = vmatpush1.msra.mxu0 0.0
      %1053 = vmatprep.mubr.f32.mxu0 0.0
      %1054 = vmatmul.mubr.f32.gmra.mrb[0].mxu0 %v984
      %v1055 = vpop.f32.mrb[0].mxu0
      %v1056 = vadd.f32 0.0, %v1055
      %v1057 = vpop.f32.mrb[0].mxu0
      %1058 = vmatprep.mubr.f32.mxu0 0.0
      %1059 = vmatmul.mubr.f32.gmra.mrb[0].mxu0 %v987
      %v1060 = vpop.f32.mrb[0].mxu0
      %v1061 = vadd.f32 0.0, %v1060
      %v1062 = vpop.f32.mrb[0].mxu0
      %1063 = vdwg.mxu0
      %v1064 = vadd.f32 %v964, %v1056
      %v1065 = vadd.f32 %v969, %v1061
      %v1067 = vlaneseq
      %v1068 = vshrl.u32 %v1067, 7
      %v1069 = vsub.s32 0, %v1068
      %v1070 = vrot.slane %v785, %v1069
      %v1072 = vmul.f32 %v1064, %v1070
      %v1073 = vmul.f32 %v1065, %v1070
      %v1075 = vlaneseq
      %v1076 = vshrl.u32 %v1075, 7
      %v1077 = vsub.s32 0, %v1076
      %v1078 = vrot.slane %v786, %v1077
      %v1080 = vadd.f32 %v1072, %v1078
      %v1081 = vadd.f32 %v1073, %v1078
      %vm1082 = vcmp.ge.f32.partialorder %v1080, 0.0
      %vm1083 = vcmp.ge.f32.partialorder %v1081, 0.0
      %v1084 = vmul.f32 %v1080, 0.1
      %v1085 = vmul.f32 %v1081, 0.1
      %v1086 = vsel %vm1082, %v1080, %v1084
      %v1087 = vsel %vm1083, %v1081, %v1085
      %v1088 = vadd.f32 %v668, %v1086
      %v1089 = vadd.f32 %v669, %v1087
      %s1090 = scalar_lea.vmem %s4, 128
      %v1091 = vld [vmem:[%s1090] sm:$0xff]
      %v1092 = vld [vmem:[%s1090 + $0x8] sm:$0xff]
      %v1093 = vld [vmem:[%s1090 + $0x10] sm:$0xff]
      %v1094 = vld [vmem:[%s1090 + $0x18] sm:$0xff]
      %v1095 = vld [vmem:[%s1090 + $0x20] sm:$0xff]
      %v1096 = vld [vmem:[%s1090 + $0x28] sm:$0xff]
      %v1097 = vld [vmem:[%s1090 + $0x30] sm:$0xff]
      %v1098 = vld [vmem:[%s1090 + $0x38] sm:$0xff]
      %v1099 = vld [vmem:[%s1090 + $0x40] sm:$0xff]
      %v1100 = vld [vmem:[%s1090 + $0x48] sm:$0xff]
      %v1101 = vld [vmem:[%s1090 + $0x50] sm:$0xff]
      %v1102 = vld [vmem:[%s1090 + $0x58] sm:$0xff]
      %v1103 = vld [vmem:[%s1090 + $0x60] sm:$0xff]
      %v1104 = vld [vmem:[%s1090 + $0x68] sm:$0xff]
      %v1105 = vld [vmem:[%s1090 + $0x70] sm:$0xff]
      %v1106 = vld [vmem:[%s1090 + $0x78] sm:$0xff]
      %1107 = vmatprep.subr.mxu0 0.0
      %1108 = vmatpush1.msra.mxu0 %v1091
      %1109 = vmatprep.subr.mxu0 0.0
      %1110 = vmatpush1.msra.mxu0 %v1092
      %1111 = vmatprep.subr.mxu0 0.0
      %1112 = vmatpush1.msra.mxu0 %v1093
      %1113 = vmatprep.subr.mxu0 0.0
      %1114 = vmatpush1.msra.mxu0 %v1094
      %1115 = vmatprep.subr.mxu0 0.0
      %1116 = vmatpush1.msra.mxu0 %v1095
      %1117 = vmatprep.subr.mxu0 0.0
      %1118 = vmatpush1.msra.mxu0 %v1096
      %1119 = vmatprep.subr.mxu0 0.0
      %1120 = vmatpush1.msra.mxu0 %v1097
      %1121 = vmatprep.subr.mxu0 0.0
      %1122 = vmatpush1.msra.mxu0 %v1098
      %1123 = vmatprep.subr.mxu0 0.0
      %1124 = vmatpush1.msra.mxu0 %v1099
      %1125 = vmatprep.subr.mxu0 0.0
      %1126 = vmatpush1.msra.mxu0 %v1100
      %1127 = vmatprep.subr.mxu0 0.0
      %1128 = vmatpush1.msra.mxu0 %v1101
      %1129 = vmatprep.subr.mxu0 0.0
      %1130 = vmatpush1.msra.mxu0 %v1102
      %1131 = vmatprep.subr.mxu0 0.0
      %1132 = vmatpush1.msra.mxu0 %v1103
      %1133 = vmatprep.subr.mxu0 0.0
      %1134 = vmatpush1.msra.mxu0 %v1104
      %1135 = vmatprep.subr.mxu0 0.0
      %1136 = vmatpush1.msra.mxu0 %v1105
      %1137 = vmatprep.subr.mxu0 0.0
      %1138 = vmatpush1.msra.mxu0 %v1106
      %1139 = vmatprep.subr.mxu0 0.0
      %1140 = vmatpush1.msra.mxu0 0.0
      %1141 = vmatprep.subr.mxu0 0.0
      %1142 = vmatpush1.msra.mxu0 0.0
      %1143 = vmatprep.subr.mxu0 0.0
      %1144 = vmatpush1.msra.mxu0 0.0
      %1145 = vmatprep.subr.mxu0 0.0
      %1146 = vmatpush1.msra.mxu0 0.0
      %1147 = vmatprep.subr.mxu0 0.0
      %1148 = vmatpush1.msra.mxu0 0.0
      %1149 = vmatprep.subr.mxu0 0.0
      %1150 = vmatpush1.msra.mxu0 0.0
      %1151 = vmatprep.subr.mxu0 0.0
      %1152 = vmatpush1.msra.mxu0 0.0
      %1153 = vmatprep.subr.mxu0 0.0
      %1154 = vmatpush1.msra.mxu0 0.0
      %1155 = vmatprep.subr.mxu0 0.0
      %1156 = vmatpush1.msra.mxu0 0.0
      %1157 = vmatprep.subr.mxu0 0.0
      %1158 = vmatpush1.msra.mxu0 0.0
      %1159 = vmatprep.subr.mxu0 0.0
      %1160 = vmatpush1.msra.mxu0 0.0
      %1161 = vmatprep.subr.mxu0 0.0
      %1162 = vmatpush1.msra.mxu0 0.0
      %1163 = vmatprep.subr.mxu0 0.0
      %1164 = vmatpush1.msra.mxu0 0.0
      %1165 = vmatprep.subr.mxu0 0.0
      %1166 = vmatpush1.msra.mxu0 0.0
      %1167 = vmatprep.subr.mxu0 0.0
      %1168 = vmatpush1.msra.mxu0 0.0
      %1169 = vmatprep.subr.mxu0 0.0
      %1170 = vmatpush1.msra.mxu0 0.0
      %1171 = vmatprep.mubr.f32.mxu0 0.0
      %1172 = vmatmul.mubr.f32.gmra.mrb[0].mxu0 %v1088
      %v1173 = vpop.f32.mrb[0].mxu0
      %v1174 = vadd.f32 0.0, %v1173
      %v1175 = vpop.f32.mrb[0].mxu0
      %1176 = vmatprep.mubr.f32.mxu0 0.0
      %1177 = vmatmul.mubr.f32.gmra.mrb[0].mxu0 %v1089
      %v1178 = vpop.f32.mrb[0].mxu0
      %v1179 = vadd.f32 0.0, %v1178
      %v1180 = vpop.f32.mrb[0].mxu0
      %1181 = vdwg.mxu0
      %s1182 = scalar_lea.vmem %s5, 1
      %v1183 = vld [vmem:[%s1182] sm:$0x1]
      %v1185 = vlaneseq
      %v1186 = vshrl.u32 %v1185, 7
      %v1187 = vsub.s32 0, %v1186
      %v1188 = vrot.slane %v1183, %v1187
      %v1190 = vmul.f32 %v1174, %v1188
      %v1191 = vmul.f32 %v1179, %v1188
      %s1192 = scalar_lea.vmem %s6, 1
      %v1193 = vld [vmem:[%s1192] sm:$0x1]
      %v1195 = vlaneseq
      %v1196 = vshrl.u32 %v1195, 7
      %v1197 = vsub.s32 0, %v1196
      %v1198 = vrot.slane %v1193, %v1197
      %v1200 = vadd.f32 %v1190, %v1198
      %v1201 = vadd.f32 %v1191, %v1198
      %vm1202 = vcmp.ge.f32.partialorder %v1200, 0.0
      %vm1203 = vcmp.ge.f32.partialorder %v1201, 0.0
      %v1204 = vmul.f32 %v1200, 0.1
      %v1205 = vmul.f32 %v1201, 0.1
      %v1206 = vsel %vm1202, %v1200, %v1204
      %v1207 = vsel %vm1203, %v1201, %v1205
      %s1208 = scalar_lea.vmem %s8, 1
      %v1209 = vld [vmem:[%s1208] sm:$0x1]
      %s1210 = scalar_lea.vmem %s9, 1
      %v1211 = vld [vmem:[%s1210] sm:$0x1]
      %1212 = vst.msk [vmem:[#allocation2 + $0x1] sm:$0xff] %vm360, %v1206
      %1213 = vst.msk [vmem:[#allocation2 + $0x9] sm:$0xff] %vm360, %v1207
      %v1214 = vld [vmem:[#allocation2] sm:$0xff]
      %v1215 = vld [vmem:[#allocation2 + $0x8] sm:$0xff]
      %s1216 = scalar_lea.vmem %s7, 192
      %v1217 = vld [vmem:[%s1216] sm:$0xff]
      %v1218 = vld [vmem:[%s1216 + $0x8] sm:$0xff]
      %v1219 = vld [vmem:[%s1216 + $0x10] sm:$0xff]
      %v1220 = vld [vmem:[%s1216 + $0x18] sm:$0xff]
      %v1221 = vld [vmem:[%s1216 + $0x20] sm:$0xff]
      %v1222 = vld [vmem:[%s1216 + $0x28] sm:$0xff]
      %v1223 = vld [vmem:[%s1216 + $0x30] sm:$0xff]
      %v1224 = vld [vmem:[%s1216 + $0x38] sm:$0xff]
      %v1225 = vld [vmem:[#allocation2 + $0x1] sm:$0xff]
      %v1226 = vld [vmem:[#allocation2 + $0x9] sm:$0xff]
      %s1227 = scalar_lea.vmem %s7, 256
      %v1228 = vld [vmem:[%s1227] sm:$0xff]
      %v1229 = vld [vmem:[%s1227 + $0x8] sm:$0xff]
      %v1230 = vld [vmem:[%s1227 + $0x10] sm:$0xff]
      %v1231 = vld [vmem:[%s1227 + $0x18] sm:$0xff]
      %v1232 = vld [vmem:[%s1227 + $0x20] sm:$0xff]
      %v1233 = vld [vmem:[%s1227 + $0x28] sm:$0xff]
      %v1234 = vld [vmem:[%s1227 + $0x30] sm:$0xff]
      %v1235 = vld [vmem:[%s1227 + $0x38] sm:$0xff]
      %v1237 = vsel %vm360, %v1225, 0
      %v1240 = vsel %vm360, %v1226, 0
      %1242 = vmatprep.subr.mxu0 0.0
      %1243 = vmatpush1.msra.mxu0 %v1228
      %1244 = vmatprep.subr.mxu0 0.0
      %1245 = vmatpush1.msra.mxu0 %v1229
      %1246 = vmatprep.subr.mxu0 0.0
      %1247 = vmatpush1.msra.mxu0 %v1230
      %1248 = vmatprep.subr.mxu0 0.0
      %1249 = vmatpush1.msra.mxu0 %v1231
      %1250 = vmatprep.subr.mxu0 0.0
      %1251 = vmatpush1.msra.mxu0 %v1232
      %1252 = vmatprep.subr.mxu0 0.0
      %1253 = vmatpush1.msra.mxu0 %v1233
      %1254 = vmatprep.subr.mxu0 0.0
      %1255 = vmatpush1.msra.mxu0 %v1234
      %1256 = vmatprep.subr.mxu0 0.0
      %1257 = vmatpush1.msra.mxu0 %v1235
      %1258 = vmatprep.subr.mxu0 0.0
      %1259 = vmatpush1.msra.mxu0 0.0
      %1260 = vmatprep.subr.mxu0 0.0
      %1261 = vmatpush1.msra.mxu0 0.0
      %1262 = vmatprep.subr.mxu0 0.0
      %1263 = vmatpush1.msra.mxu0 0.0
      %1264 = vmatprep.subr.mxu0 0.0
      %1265 = vmatpush1.msra.mxu0 0.0
      %1266 = vmatprep.subr.mxu0 0.0
      %1267 = vmatpush1.msra.mxu0 0.0
      %1268 = vmatprep.subr.mxu0 0.0
      %1269 = vmatpush1.msra.mxu0 0.0
      %1270 = vmatprep.subr.mxu0 0.0
      %1271 = vmatpush1.msra.mxu0 0.0
      %1272 = vmatprep.subr.mxu0 0.0
      %1273 = vmatpush1.msra.mxu0 0.0
      %1274 = vmatprep.subr.mxu0 0.0
      %1275 = vmatpush1.msra.mxu0 0.0
      %1276 = vmatprep.subr.mxu0 0.0
      %1277 = vmatpush1.msra.mxu0 0.0
      %1278 = vmatprep.subr.mxu0 0.0
      %1279 = vmatpush1.msra.mxu0 0.0
      %1280 = vmatprep.subr.mxu0 0.0
      %1281 = vmatpush1.msra.mxu0 0.0
      %1282 = vmatprep.subr.mxu0 0.0
      %1283 = vmatpush1.msra.mxu0 0.0
      %1284 = vmatprep.subr.mxu0 0.0
      %1285 = vmatpush1.msra.mxu0 0.0
      %1286 = vmatprep.subr.mxu0 0.0
      %1287 = vmatpush1.msra.mxu0 0.0
      %1288 = vmatprep.subr.mxu0 0.0
      %1289 = vmatpush1.msra.mxu0 0.0
      %1290 = vmatprep.subr.mxu0 0.0
      %1291 = vmatpush1.msra.mxu0 0.0
      %1292 = vmatprep.subr.mxu0 0.0
      %1293 = vmatpush1.msra.mxu0 0.0
      %1294 = vmatprep.subr.mxu0 0.0
      %1295 = vmatpush1.msra.mxu0 0.0
      %1296 = vmatprep.subr.mxu0 0.0
      %1297 = vmatpush1.msra.mxu0 0.0
      %1298 = vmatprep.subr.mxu0 0.0
      %1299 = vmatpush1.msra.mxu0 0.0
      %1300 = vmatprep.subr.mxu0 0.0
      %1301 = vmatpush1.msra.mxu0 0.0
      %1302 = vmatprep.subr.mxu0 0.0
      %1303 = vmatpush1.msra.mxu0 0.0
      %1304 = vmatprep.subr.mxu0 0.0
      %1305 = vmatpush1.msra.mxu0 0.0
      %1306 = vmatprep.mubr.f32.mxu0 0.0
      %1307 = vmatmul.mubr.f32.gmra.mrb[0].mxu0 %v1237
      %v1308 = vpop.f32.mrb[0].mxu0
      %v1309 = vadd.f32 0.0, %v1308
      %v1310 = vpop.f32.mrb[0].mxu0
      %1311 = vmatprep.mubr.f32.mxu0 0.0
      %1312 = vmatmul.mubr.f32.gmra.mrb[0].mxu0 %v1240
      %v1313 = vpop.f32.mrb[0].mxu0
      %v1314 = vadd.f32 0.0, %v1313
      %v1315 = vpop.f32.mrb[0].mxu0
      %1316 = vdwg.mxu0
      %v1318 = vsel %vm360, %v1214, 0
      %v1321 = vsel %vm360, %v1215, 0
      %1323 = vmatprep.subr.mxu0 0.0
      %1324 = vmatpush1.msra.mxu0 %v1217
      %1325 = vmatprep.subr.mxu0 0.0
      %1326 = vmatpush1.msra.mxu0 %v1218
      %1327 = vmatprep.subr.mxu0 0.0
      %1328 = vmatpush1.msra.mxu0 %v1219
      %1329 = vmatprep.subr.mxu0 0.0
      %1330 = vmatpush1.msra.mxu0 %v1220
      %1331 = vmatprep.subr.mxu0 0.0
      %1332 = vmatpush1.msra.mxu0 %v1221
      %1333 = vmatprep.subr.mxu0 0.0
      %1334 = vmatpush1.msra.mxu0 %v1222
      %1335 = vmatprep.subr.mxu0 0.0
      %1336 = vmatpush1.msra.mxu0 %v1223
      %1337 = vmatprep.subr.mxu0 0.0
      %1338 = vmatpush1.msra.mxu0 %v1224
      %1339 = vmatprep.subr.mxu0 0.0
      %1340 = vmatpush1.msra.mxu0 0.0
      %1341 = vmatprep.subr.mxu0 0.0
      %1342 = vmatpush1.msra.mxu0 0.0
      %1343 = vmatprep.subr.mxu0 0.0
      %1344 = vmatpush1.msra.mxu0 0.0
      %1345 = vmatprep.subr.mxu0 0.0
      %1346 = vmatpush1.msra.mxu0 0.0
      %1347 = vmatprep.subr.mxu0 0.0
      %1348 = vmatpush1.msra.mxu0 0.0
      %1349 = vmatprep.subr.mxu0 0.0
      %1350 = vmatpush1.msra.mxu0 0.0
      %1351 = vmatprep.subr.mxu0 0.0
      %1352 = vmatpush1.msra.mxu0 0.0
      %1353 = vmatprep.subr.mxu0 0.0
      %1354 = vmatpush1.msra.mxu0 0.0
      %1355 = vmatprep.subr.mxu0 0.0
      %1356 = vmatpush1.msra.mxu0 0.0
      %1357 = vmatprep.subr.mxu0 0.0
      %1358 = vmatpush1.msra.mxu0 0.0
      %1359 = vmatprep.subr.mxu0 0.0
      %1360 = vmatpush1.msra.mxu0 0.0
      %1361 = vmatprep.subr.mxu0 0.0
      %1362 = vmatpush1.msra.mxu0 0.0
      %1363 = vmatprep.subr.mxu0 0.0
      %1364 = vmatpush1.msra.mxu0 0.0
      %1365 = vmatprep.subr.mxu0 0.0
      %1366 = vmatpush1.msra.mxu0 0.0
      %1367 = vmatprep.subr.mxu0 0.0
      %1368 = vmatpush1.msra.mxu0 0.0
      %1369 = vmatprep.subr.mxu0 0.0
      %1370 = vmatpush1.msra.mxu0 0.0
      %1371 = vmatprep.subr.mxu0 0.0
      %1372 = vmatpush1.msra.mxu0 0.0
      %1373 = vmatprep.subr.mxu0 0.0
      %1374 = vmatpush1.msra.mxu0 0.0
      %1375 = vmatprep.subr.mxu0 0.0
      %1376 = vmatpush1.msra.mxu0 0.0
      %1377 = vmatprep.subr.mxu0 0.0
      %1378 = vmatpush1.msra.mxu0 0.0
      %1379 = vmatprep.subr.mxu0 0.0
      %1380 = vmatpush1.msra.mxu0 0.0
      %1381 = vmatprep.subr.mxu0 0.0
      %1382 = vmatpush1.msra.mxu0 0.0
      %1383 = vmatprep.subr.mxu0 0.0
      %1384 = vmatpush1.msra.mxu0 0.0
      %1385 = vmatprep.subr.mxu0 0.0
      %1386 = vmatpush1.msra.mxu0 0.0
      %1387 = vmatprep.mubr.f32.mxu0 0.0
      %1388 = vmatmul.mubr.f32.gmra.mrb[0].mxu0 %v1318
      %v1389 = vpop.f32.mrb[0].mxu0
      %v1390 = vadd.f32 %v1309, %v1389
      %v1391 = vpop.f32.mrb[0].mxu0
      %1392 = vmatprep.mubr.f32.mxu0 0.0
      %1393 = vmatmul.mubr.f32.gmra.mrb[0].mxu0 %v1321
      %v1394 = vpop.f32.mrb[0].mxu0
      %v1395 = vadd.f32 %v1314, %v1394
      %v1396 = vpop.f32.mrb[0].mxu0
      %1397 = vdwg.mxu0
      %v1398 = vld [vmem:[#allocation2 + $0x2] sm:$0xff]
      %v1399 = vld [vmem:[#allocation2 + $0xa] sm:$0xff]
      %s1400 = scalar_lea.vmem %s7, 320
      %v1401 = vld [vmem:[%s1400] sm:$0xff]
      %v1402 = vld [vmem:[%s1400 + $0x8] sm:$0xff]
      %v1403 = vld [vmem:[%s1400 + $0x10] sm:$0xff]
      %v1404 = vld [vmem:[%s1400 + $0x18] sm:$0xff]
      %v1405 = vld [vmem:[%s1400 + $0x20] sm:$0xff]
      %v1406 = vld [vmem:[%s1400 + $0x28] sm:$0xff]
      %v1407 = vld [vmem:[%s1400 + $0x30] sm:$0xff]
      %v1408 = vld [vmem:[%s1400 + $0x38] sm:$0xff]
      %v1410 = vsel %vm360, %v1398, 0
      %v1413 = vsel %vm360, %v1399, 0
      %1415 = vmatprep.subr.mxu0 0.0
      %1416 = vmatpush1.msra.mxu0 %v1401
      %1417 = vmatprep.subr.mxu0 0.0
      %1418 = vmatpush1.msra.mxu0 %v1402
      %1419 = vmatprep.subr.mxu0 0.0
      %1420 = vmatpush1.msra.mxu0 %v1403
      %1421 = vmatprep.subr.mxu0 0.0
      %1422 = vmatpush1.msra.mxu0 %v1404
      %1423 = vmatprep.subr.mxu0 0.0
      %1424 = vmatpush1.msra.mxu0 %v1405
      %1425 = vmatprep.subr.mxu0 0.0
      %1426 = vmatpush1.msra.mxu0 %v1406
      %1427 = vmatprep.subr.mxu0 0.0
      %1428 = vmatpush1.msra.mxu0 %v1407
      %1429 = vmatprep.subr.mxu0 0.0
      %1430 = vmatpush1.msra.mxu0 %v1408
      %1431 = vmatprep.subr.mxu0 0.0
      %1432 = vmatpush1.msra.mxu0 0.0
      %1433 = vmatprep.subr.mxu0 0.0
      %1434 = vmatpush1.msra.mxu0 0.0
      %1435 = vmatprep.subr.mxu0 0.0
      %1436 = vmatpush1.msra.mxu0 0.0
      %1437 = vmatprep.subr.mxu0 0.0
      %1438 = vmatpush1.msra.mxu0 0.0
      %1439 = vmatprep.subr.mxu0 0.0
      %1440 = vmatpush1.msra.mxu0 0.0
      %1441 = vmatprep.subr.mxu0 0.0
      %1442 = vmatpush1.msra.mxu0 0.0
      %1443 = vmatprep.subr.mxu0 0.0
      %1444 = vmatpush1.msra.mxu0 0.0
      %1445 = vmatprep.subr.mxu0 0.0
      %1446 = vmatpush1.msra.mxu0 0.0
      %1447 = vmatprep.subr.mxu0 0.0
      %1448 = vmatpush1.msra.mxu0 0.0
      %1449 = vmatprep.subr.mxu0 0.0
      %1450 = vmatpush1.msra.mxu0 0.0
      %1451 = vmatprep.subr.mxu0 0.0
      %1452 = vmatpush1.msra.mxu0 0.0
      %1453 = vmatprep.subr.mxu0 0.0
      %1454 = vmatpush1.msra.mxu0 0.0
      %1455 = vmatprep.subr.mxu0 0.0
      %1456 = vmatpush1.msra.mxu0 0.0
      %1457 = vmatprep.subr.mxu0 0.0
      %1458 = vmatpush1.msra.mxu0 0.0
      %1459 = vmatprep.subr.mxu0 0.0
      %1460 = vmatpush1.msra.mxu0 0.0
      %1461 = vmatprep.subr.mxu0 0.0
      %1462 = vmatpush1.msra.mxu0 0.0
      %1463 = vmatprep.subr.mxu0 0.0
      %1464 = vmatpush1.msra.mxu0 0.0
      %1465 = vmatprep.subr.mxu0 0.0
      %1466 = vmatpush1.msra.mxu0 0.0
      %1467 = vmatprep.subr.mxu0 0.0
      %1468 = vmatpush1.msra.mxu0 0.0
      %1469 = vmatprep.subr.mxu0 0.0
      %1470 = vmatpush1.msra.mxu0 0.0
      %1471 = vmatprep.subr.mxu0 0.0
      %1472 = vmatpush1.msra.mxu0 0.0
      %1473 = vmatprep.subr.mxu0 0.0
      %1474 = vmatpush1.msra.mxu0 0.0
      %1475 = vmatprep.subr.mxu0 0.0
      %1476 = vmatpush1.msra.mxu0 0.0
      %1477 = vmatprep.subr.mxu0 0.0
      %1478 = vmatpush1.msra.mxu0 0.0
      %1479 = vmatprep.mubr.f32.mxu0 0.0
      %1480 = vmatmul.mubr.f32.gmra.mrb[0].mxu0 %v1410
      %v1481 = vpop.f32.mrb[0].mxu0
      %v1482 = vadd.f32 0.0, %v1481
      %v1483 = vpop.f32.mrb[0].mxu0
      %1484 = vmatprep.mubr.f32.mxu0 0.0
      %1485 = vmatmul.mubr.f32.gmra.mrb[0].mxu0 %v1413
      %v1486 = vpop.f32.mrb[0].mxu0
      %v1487 = vadd.f32 0.0, %v1486
      %v1488 = vpop.f32.mrb[0].mxu0
      %1489 = vdwg.mxu0
      %v1490 = vadd.f32 %v1390, %v1482
      %v1491 = vadd.f32 %v1395, %v1487
      %v1493 = vlaneseq
      %v1494 = vshrl.u32 %v1493, 7
      %v1495 = vsub.s32 0, %v1494
      %v1496 = vrot.slane %v1209, %v1495
      %v1498 = vmul.f32 %v1490, %v1496
      %v1499 = vmul.f32 %v1491, %v1496
      %v1501 = vlaneseq
      %v1502 = vshrl.u32 %v1501, 7
      %v1503 = vsub.s32 0, %v1502
      %v1504 = vrot.slane %v1211, %v1503
      %v1506 = vadd.f32 %v1498, %v1504
      %v1507 = vadd.f32 %v1499, %v1504
      %vm1508 = vcmp.ge.f32.partialorder %v1506, 0.0
      %vm1509 = vcmp.ge.f32.partialorder %v1507, 0.0
      %v1510 = vmul.f32 %v1506, 0.1
      %v1511 = vmul.f32 %v1507, 0.1
      %v1512 = vsel %vm1508, %v1506, %v1510
      %v1513 = vsel %vm1509, %v1507, %v1511
      %v1514 = vadd.f32 %v1088, %v1512
      %v1515 = vadd.f32 %v1089, %v1513
      %1516 = vst [vmem:[%s359] sm:$0xff] %v1514
      %1517 = vst [vmem:[%s359 + $0x8] sm:$0xff] %v1515
      %p1518 = scmp.lt.s32.totalorder %s21, 1
      %s1519 = scalar_select %p1518, %s21, 1
      %s1520 = smul.addr %s1519, 2
      %s1521 = smul.addr %s1520, 8
      %s1522 = scalar_lea.vmem %s10, %s1521
      // Predicated region
      $region61: #{block_forward.1} parent=59 // pred_check
        %p1523 = pneg %p254
      $region62: #{block_forward.1} parent=59 // pred_check_branch
        %1525 = sbr.rel (%p1523) target = $region64
      $region63: #{block_forward.1} parent=59 // pred_region
        _
      $region64: #{block_forward.1} parent=59 // pred_fallthru
        _
    $region60: #{block_forward.1} parent=5 // pred_fallthru
      _
    %p1526 = scmp.le.s32.totalorder 2, %s16
    // Predicated region
    $region65: #{block_forward.1} parent=5 // pred_check
      %p1527 = pneg %p1526
    $region66: #{block_forward.1} parent=5 // pred_check_branch
      %1529 = sbr.rel (%p1527) target = $region68
    $region67: #{block_forward.1} parent=5 // pred_region
      %s1530 = ssub.s32 %s16, 2
      // Predicated region
      $region69: #{block_forward.1} parent=67 // pred_check
        %p1531 = pneg %p260
      $region70: #{block_forward.1} parent=67 // pred_check_branch
        %1533 = sbr.rel (%p1531) target = $region72
      $region71: #{block_forward.1} parent=67 // pred_region
        %p1534 = scmp.lt.s32.totalorder %s22, 1
        %s1535 = scalar_select %p1534, %s22, 1
        %s1536 = smul.addr %s1535, 2
        %s1537 = smul.addr %s1536, 8
        %s1538 = scalar_lea.vmem %s10, %s1537
      $region72: #{block_forward.1} parent=67 // pred_fallthru
        _
    $region68: #{block_forward.1} parent=5 // pred_fallthru
      _
  $region6: #{block_forward.1} parent=0 // loop_footer
    %s20 = sadd.s32 1, %s16
  $region7: #{block_forward.1} parent=0 // loop_footer_branch
    %15 = sbr.rel target = $region3
  $region8: #{block_forward.1} parent=0 // loop_exit
    _

</llo_original>
